<compile_context>
chip_gen: v7x
topology: tpu7x:2x2x1
jax: 0.10.0
libtpu: 0.0.40
codegen_flags: <defaults>
</compile_context>

<pallas_src>
import functools

import jax
import jax.numpy as jnp
from jax.experimental import pallas as pl
from jax.experimental.pallas import tpu as pltpu

IN_EPS = 1e-3   # nn.InstanceNorm1d(eps=0.001)
BN_EPS = 1e-5   # nn.BatchNorm1d default eps

# Row offsets of the conv weights inside the packed weight buffer (all 8-aligned).
_W1_ROW, _W2_ROW, _W3_ROW, _W4_ROW = 0, 64, 80, 88
_WPACK_ROWS = 96
_MXU_MIN_K = 32   # contractions below this run as unrolled VPU FMAs


def _conv_k1(W, h, k):
    """Pointwise conv of one batch segment: (cout, k) @ (k, N) -> (cout, N)."""
    if k >= _MXU_MIN_K:
        # Lane-dense MXU matmul (layer 2's K=64 contraction, or layer 1 when
        # channels is the real net_channels=128).
        return jnp.dot(W, h, preferred_element_type=jnp.float32)
    # Tiny contraction: unrolled VPU broadcast FMAs with up to 4 independent
    # partial accumulators (4 VALU slots/cycle) + tree combine, instead of a
    # single serial acc = acc + ... chain that is FMA-latency bound.
    nacc = min(4, k)
    acc = [W[:, c:c + 1] * h[c:c + 1, :] for c in range(nacc)]
    for c in range(nacc, k):
        acc[c % nacc] = acc[c % nacc] + W[:, c:c + 1] * h[c:c + 1, :]
    while len(acc) > 1:
        nxt = [acc[i] + acc[i + 1] for i in range(0, len(acc) - 1, 2)]
        if len(acc) % 2:
            nxt.append(acc[-1])
        acc = nxt
    return acc[0]


def _inliner_kernel(x_ref, wp_ref, vp_ref, out_ref, *, batch, npts, cin):
    inv_n = 1.0 / npts
    inv_b = 1.0 / batch

    P = wp_ref[...].astype(jnp.float32)     # (96, max(cin, 64)) packed conv weights
    V = vp_ref[...].astype(jnp.float32)     # (64, 8) packed gammas / betas / b4

    def norm_relu_layer(h_segs, row0, cout, k, gcol):
        # Conv1d(k=1) -> InstanceNorm1d(IN_EPS) -> BatchNorm1d(train) -> ReLU,
        # with BatchNorm folded analytically into the InstanceNorm pass:
        # after IN each (b, c) segment has mean exactly 0, so BN mean == 0 and
        # BN var_c == (1/B) * sum_b v_bc / (v_bc + IN_EPS).  Only the tiny
        # (cout, 1) per-segment statistics couple segments -> one reduction pass
        # and one fused scale/shift/relu pass per layer, no slab concatenation.
        W = P[row0:row0 + cout, 0:k]
        gamma = V[0:cout, gcol:gcol + 1]
        beta = V[0:cout, gcol + 1:gcol + 2]

        g_segs, m_segs, s_segs = [], [], []
        bn_var = jnp.zeros((cout, 1), jnp.float32)
        # TODO(synk): if `batch` grows beyond a handful, replace this static
        # python unroll with lax.fori_loop over a VMEM scratch slab (or a grid
        # axis) to bound live ranges; and on v6e/v7x at large N, offload the two
        # lane reductions below to the idle MXU via a 0/1 segment-indicator
        # matmul.  At B=2, N=128 the kernel is launch-overhead bound and the
        # exact f32 XLU reductions are the safer choice.
        for h in h_segs:
            g = _conv_k1(W, h, k)                                   # (cout, N)
            m = jnp.sum(g, axis=1, keepdims=True) * inv_n           # E[x]
            ms = jnp.sum(g * g, axis=1, keepdims=True) * inv_n      # E[x^2]
            v = ms - m * m                                          # biased var
            s = jax.lax.rsqrt(v + IN_EPS)                           # IN scale
            bn_var = bn_var + v * (s * s)      # variance of the IN-normalized seg
            g_segs.append(g)
            m_segs.append(m)
            s_segs.append(s)
        bn_scale = gamma * jax.lax.rsqrt(bn_var * inv_b + BN_EPS)   # (cout, 1)

        out = []
        for g, m, s in zip(g_segs, m_segs, s_segs):
            a = s * bn_scale                   # fused IN*BN per-channel scale
            t = beta - m * a                   # fused shift (BN mean == 0)
            out.append(jnp.maximum(g * a + t, 0.0))
        return out

    # Per-batch segments sliced straight out of the (B, C, N) input block: the
    # whole pipeline is pointwise over N and per-segment for the IN statistics,
    # so no (C, B*N) relayout / lane-axis concatenate is ever materialized.
    h = [x_ref[b].astype(jnp.float32) for b in range(batch)]

    # Conv biases of layers 1-3 are mathematically dead (cancelled by the
    # InstanceNorm mean subtraction) and are never loaded.
    h = norm_relu_layer(h, _W1_ROW, 64, cin, 0)
    h = norm_relu_layer(h, _W2_ROW, 16, 64, 2)
    h = norm_relu_layer(h, _W3_ROW, 4, 16, 4)

    W4 = P[_W4_ROW:_W4_ROW + 1, 0:4]
    b4 = V[0:1, 6:7]
    for b in range(batch):
        y = _conv_k1(W4, h[b], 4) + b4         # final conv keeps its bias
        out_ref[b] = y.astype(out_ref.dtype)   # lane-dense (1, N) store


def _pack_params(params, channels):
    """Pack the 14 tiny parameter tensors into 2 lane-friendly VMEM buffers."""
    (w1, b1, g1, be1, w2, b2, g2, be2, w3, b3, g3, be3, w4, b4) = params
    del b1, b2, b3   # cancelled by InstanceNorm; kernel never uses them
    width = max(channels, 64)
    wpack = jnp.zeros((_WPACK_ROWS, width), jnp.float32)
    wpack = wpack.at[_W1_ROW:_W1_ROW + 64, 0:channels].set(w1)
    wpack = wpack.at[_W2_ROW:_W2_ROW + 16, 0:64].set(w2)
    wpack = wpack.at[_W3_ROW:_W3_ROW + 4, 0:16].set(w3)
    wpack = wpack.at[_W4_ROW:_W4_ROW + 1, 0:4].set(w4)

    vpack = jnp.zeros((64, 8), jnp.float32)
    vpack = vpack.at[:, 0:1].set(g1)
    vpack = vpack.at[:, 1:2].set(be1)
    vpack = vpack.at[0:16, 2:3].set(g2)
    vpack = vpack.at[0:16, 3:4].set(be2)
    vpack = vpack.at[0:4, 4:5].set(g3)
    vpack = vpack.at[0:4, 5:6].set(be3)
    vpack = vpack.at[0:1, 6:7].set(b4)
    return wpack, vpack


def inliner_predictor(x, params):
    """x: (B, C, N) f32 -> (B, 1, N); InlinerPredictor forward in .train() mode."""
    B, C, N = x.shape
    wpack, vpack = _pack_params(params, C)
    kernel = functools.partial(_inliner_kernel, batch=B, npts=N, cin=C)
    return pl.pallas_call(
        kernel,
        out_shape=jax.ShapeDtypeStruct((B, 1, N), x.dtype),
        grid=(1,),
        in_specs=[pl.BlockSpec((B, C, N), lambda i: (0, 0, 0)),
                  pl.BlockSpec(wpack.shape, lambda i: (0, 0)),
                  pl.BlockSpec(vpack.shape, lambda i: (0, 0))],
        out_specs=pl.BlockSpec((B, 1, N), lambda i: (0, 0, 0)),
        compiler_params=pltpu.CompilerParams(
            dimension_semantics=("arbitrary",)),
        # TODO(synk): when B*N grows, add a "parallel" grid axis over batches
        # (engages v7x's second TensorCore) -- the analytic BN fold means only the
        # (C, B) per-segment IN statistics need cross-tile combining -- and size
        # tiles against v7x's 64 MiB physical / 32 MiB scoped VMEM (about half
        # the v5e/v6e tile) via vmem_limit_bytes, keeping tiles >= ~512 lanes.
    )(x, wpack, vpack)


def init_params(key, channels):
    """Deterministic synthetic parameters matching the nn.Module shapes."""
    dims = [(64, channels), (16, 64), (4, 16), (1, 4)]
    params = []
    for i, (cout, cin) in enumerate(dims):
        key, kw, kb = jax.random.split(key, 3)
        scale = 1.0 / jnp.sqrt(jnp.float32(cin))
        w = jax.random.uniform(kw, (cout, cin), jnp.float32, -scale, scale)
        b = jax.random.uniform(kb, (cout, 1), jnp.float32, -scale, scale)
        params.extend([w, b])
        if i < 3:  # BatchNorm affine params (gamma=1, beta=0 at init)
            params.extend([jnp.ones((cout, 1), jnp.float32),
                           jnp.zeros((cout, 1), jnp.float32)])
    return tuple(params)


def _reference(x, params):
    """Pure-JAX reference with the full PyTorch semantics (incl. dead biases)."""
    (w1, b1, g1, be1, w2, b2, g2, be2, w3, b3, g3, be3, w4, b4) = params

    def conv(h, w, b):
        return jnp.einsum('oc,bcn->bon', w, h,
                          precision=jax.lax.Precision.HIGHEST) + b[None]

    def inorm(h):
        m = h.mean(axis=2, keepdims=True)
        v = jnp.square(h - m).mean(axis=2, keepdims=True)
        return (h - m) / jnp.sqrt(v + IN_EPS)

    def bnorm(h, g, be):
        m = h.mean(axis=(0, 2), keepdims=True)
        v = jnp.square(h - m).mean(axis=(0, 2), keepdims=True)
        return (h - m) / jnp.sqrt(v + BN_EPS) * g[None] + be[None]

    h = jnp.maximum(bnorm(inorm(conv(x, w1, b1)), g1, be1), 0.0)
    h = jnp.maximum(bnorm(inorm(conv(h, w2, b2)), g2, be2), 0.0)
    h = jnp.maximum(bnorm(inorm(conv(h, w3, b3)), g3, be3), 0.0)
    return conv(h, w4, b4)


if __name__ == "__main__":
    B, C, N = 2, 4, 128
    key = jax.random.PRNGKey(0)
    kx, kp = jax.random.split(key)
    x = jax.random.normal(kx, (B, C, N), jnp.float32)
    params = init_params(kp, C)

    out = jax.block_until_ready(inliner_predictor(x, params))
    assert out.shape == (B, 1, N), out.shape

    ref = jax.block_until_ready(_reference(x, params))
    # Tolerance leaves headroom for MXU f32 pass-precision differences between
    # the in-kernel matmul and the XLA reference einsum; the norm statistics and
    # analytic BN fold themselves agree far tighter than this.
    err = float(jnp.max(jnp.abs(out - ref)))
    assert jnp.allclose(out, ref, atol=5e-3, rtol=5e-3), err

    print("KERNEL_OK")
</pallas_src>

<mosaic_0001>
module attributes {stable_mosaic.version = 11 : i64} {
  func.func @_inliner_kernel(%arg0: i32, %arg1: memref<2x4x128xf32, #tpu.memory_space<vmem>>, %arg2: memref<96x64xf32, #tpu.memory_space<vmem>>, %arg3: memref<64x8xf32, #tpu.memory_space<vmem>>, %arg4: memref<2x1x128xf32, #tpu.memory_space<vmem>>) attributes {dimension_semantics = [#tpu.dimension_semantics<arbitrary>], iteration_bounds = array<i64: 1>, scalar_prefetch = 0 : i64, scratch_operands = 0 : i64, tpu.core_type = #tpu.core_type<tc>, window_params = [{pipeline_mode = #tpu.pipeline_mode<synchronous>, transform_indices = @transform_0, window_bounds = array<i64: 2, 4, 128>}, {pipeline_mode = #tpu.pipeline_mode<synchronous>, transform_indices = @transform_1, window_bounds = array<i64: 96, 64>}, {pipeline_mode = #tpu.pipeline_mode<synchronous>, transform_indices = @transform_2, window_bounds = array<i64: 64, 8>}, {pipeline_mode = #tpu.pipeline_mode<synchronous>, transform_indices = @transform_3, window_bounds = array<i64: 2, 1, 128>}]} {
    %c0 = arith.constant 0 : index
    %c0_0 = arith.constant 0 : index
    %0 = vector.load %arg2[%c0, %c0_0] : memref<96x64xf32, #tpu.memory_space<vmem>>, vector<96x64xf32>
    %c0_1 = arith.constant 0 : index
    %c0_2 = arith.constant 0 : index
    %1 = vector.load %arg3[%c0_1, %c0_2] : memref<64x8xf32, #tpu.memory_space<vmem>>, vector<64x8xf32>
    %c0_3 = arith.constant 0 : index
    %c0_4 = arith.constant 0 : index
    %c0_5 = arith.constant 0 : index
    %2 = vector.load %arg1[%c0_3, %c0_4, %c0_5] : memref<2x4x128xf32, #tpu.memory_space<vmem>>, vector<1x4x128xf32>
    %3 = vector.shape_cast %2 : vector<1x4x128xf32> to vector<4x128xf32>
    %c1 = arith.constant 1 : index
    %c0_6 = arith.constant 0 : index
    %c0_7 = arith.constant 0 : index
    %4 = vector.load %arg1[%c1, %c0_6, %c0_7] : memref<2x4x128xf32, #tpu.memory_space<vmem>>, vector<1x4x128xf32>
    %5 = vector.shape_cast %4 : vector<1x4x128xf32> to vector<4x128xf32>
    %6 = vector.extract_strided_slice %0 {offsets = [0, 0], sizes = [64, 4], strides = [1, 1]} : vector<96x64xf32> to vector<64x4xf32>
    %7 = vector.extract_strided_slice %1 {offsets = [0, 0], sizes = [64, 1], strides = [1, 1]} : vector<64x8xf32> to vector<64x1xf32>
    %8 = vector.extract_strided_slice %1 {offsets = [0, 1], sizes = [64, 1], strides = [1, 1]} : vector<64x8xf32> to vector<64x1xf32>
    %cst = arith.constant 0.000000e+00 : f32
    %9 = vector.broadcast %cst : f32 to vector<64x1xf32>
    %10 = vector.extract_strided_slice %6 {offsets = [0, 0], sizes = [64, 1], strides = [1, 1]} : vector<64x4xf32> to vector<64x1xf32>
    %11 = vector.extract_strided_slice %3 {offsets = [0, 0], sizes = [1, 128], strides = [1, 1]} : vector<4x128xf32> to vector<1x128xf32>
    %12 = vector.broadcast %10 : vector<64x1xf32> to vector<64x128xf32>
    %13 = vector.broadcast %11 : vector<1x128xf32> to vector<64x128xf32>
    %14 = arith.mulf %12, %13 : vector<64x128xf32>
    %15 = vector.extract_strided_slice %6 {offsets = [0, 1], sizes = [64, 1], strides = [1, 1]} : vector<64x4xf32> to vector<64x1xf32>
    %16 = vector.extract_strided_slice %3 {offsets = [1, 0], sizes = [1, 128], strides = [1, 1]} : vector<4x128xf32> to vector<1x128xf32>
    %17 = vector.broadcast %15 : vector<64x1xf32> to vector<64x128xf32>
    %18 = vector.broadcast %16 : vector<1x128xf32> to vector<64x128xf32>
    %19 = arith.mulf %17, %18 : vector<64x128xf32>
    %20 = vector.extract_strided_slice %6 {offsets = [0, 2], sizes = [64, 1], strides = [1, 1]} : vector<64x4xf32> to vector<64x1xf32>
    %21 = vector.extract_strided_slice %3 {offsets = [2, 0], sizes = [1, 128], strides = [1, 1]} : vector<4x128xf32> to vector<1x128xf32>
    %22 = vector.broadcast %20 : vector<64x1xf32> to vector<64x128xf32>
    %23 = vector.broadcast %21 : vector<1x128xf32> to vector<64x128xf32>
    %24 = arith.mulf %22, %23 : vector<64x128xf32>
    %25 = vector.extract_strided_slice %6 {offsets = [0, 3], sizes = [64, 1], strides = [1, 1]} : vector<64x4xf32> to vector<64x1xf32>
    %26 = vector.extract_strided_slice %3 {offsets = [3, 0], sizes = [1, 128], strides = [1, 1]} : vector<4x128xf32> to vector<1x128xf32>
    %27 = vector.broadcast %25 : vector<64x1xf32> to vector<64x128xf32>
    %28 = vector.broadcast %26 : vector<1x128xf32> to vector<64x128xf32>
    %29 = arith.mulf %27, %28 : vector<64x128xf32>
    %30 = arith.addf %14, %19 : vector<64x128xf32>
    %31 = arith.addf %24, %29 : vector<64x128xf32>
    %32 = arith.addf %30, %31 : vector<64x128xf32>
    %cst_8 = arith.constant dense<0.000000e+00> : vector<64xf32>
    %33 = vector.multi_reduction <add>, %32, %cst_8 [1] : vector<64x128xf32> to vector<64xf32>
    %34 = vector.shape_cast %33 : vector<64xf32> to vector<64x1xf32>
    %cst_9 = arith.constant 7.812500e-03 : f32
    %35 = vector.broadcast %cst_9 : f32 to vector<64x1xf32>
    %36 = arith.mulf %34, %35 : vector<64x1xf32>
    %37 = arith.mulf %32, %32 : vector<64x128xf32>
    %cst_10 = arith.constant dense<0.000000e+00> : vector<64xf32>
    %38 = vector.multi_reduction <add>, %37, %cst_10 [1] : vector<64x128xf32> to vector<64xf32>
    %39 = vector.shape_cast %38 : vector<64xf32> to vector<64x1xf32>
    %cst_11 = arith.constant 7.812500e-03 : f32
    %40 = vector.broadcast %cst_11 : f32 to vector<64x1xf32>
    %41 = arith.mulf %39, %40 : vector<64x1xf32>
    %42 = arith.mulf %36, %36 : vector<64x1xf32>
    %43 = arith.subf %41, %42 : vector<64x1xf32>
    %cst_12 = arith.constant 1.000000e-03 : f32
    %44 = vector.broadcast %cst_12 : f32 to vector<64x1xf32>
    %45 = arith.addf %43, %44 : vector<64x1xf32>
    %46 = math.rsqrt %45 : vector<64x1xf32>
    %47 = arith.mulf %46, %46 : vector<64x1xf32>
    %48 = arith.mulf %43, %47 : vector<64x1xf32>
    %49 = arith.addf %9, %48 : vector<64x1xf32>
    %50 = vector.extract_strided_slice %6 {offsets = [0, 0], sizes = [64, 1], strides = [1, 1]} : vector<64x4xf32> to vector<64x1xf32>
    %51 = vector.extract_strided_slice %5 {offsets = [0, 0], sizes = [1, 128], strides = [1, 1]} : vector<4x128xf32> to vector<1x128xf32>
    %52 = vector.broadcast %50 : vector<64x1xf32> to vector<64x128xf32>
    %53 = vector.broadcast %51 : vector<1x128xf32> to vector<64x128xf32>
    %54 = arith.mulf %52, %53 : vector<64x128xf32>
    %55 = vector.extract_strided_slice %6 {offsets = [0, 1], sizes = [64, 1], strides = [1, 1]} : vector<64x4xf32> to vector<64x1xf32>
    %56 = vector.extract_strided_slice %5 {offsets = [1, 0], sizes = [1, 128], strides = [1, 1]} : vector<4x128xf32> to vector<1x128xf32>
    %57 = vector.broadcast %55 : vector<64x1xf32> to vector<64x128xf32>
    %58 = vector.broadcast %56 : vector<1x128xf32> to vector<64x128xf32>
    %59 = arith.mulf %57, %58 : vector<64x128xf32>
    %60 = vector.extract_strided_slice %6 {offsets = [0, 2], sizes = [64, 1], strides = [1, 1]} : vector<64x4xf32> to vector<64x1xf32>
    %61 = vector.extract_strided_slice %5 {offsets = [2, 0], sizes = [1, 128], strides = [1, 1]} : vector<4x128xf32> to vector<1x128xf32>
    %62 = vector.broadcast %60 : vector<64x1xf32> to vector<64x128xf32>
    %63 = vector.broadcast %61 : vector<1x128xf32> to vector<64x128xf32>
    %64 = arith.mulf %62, %63 : vector<64x128xf32>
    %65 = vector.extract_strided_slice %6 {offsets = [0, 3], sizes = [64, 1], strides = [1, 1]} : vector<64x4xf32> to vector<64x1xf32>
    %66 = vector.extract_strided_slice %5 {offsets = [3, 0], sizes = [1, 128], strides = [1, 1]} : vector<4x128xf32> to vector<1x128xf32>
    %67 = vector.broadcast %65 : vector<64x1xf32> to vector<64x128xf32>
    %68 = vector.broadcast %66 : vector<1x128xf32> to vector<64x128xf32>
    %69 = arith.mulf %67, %68 : vector<64x128xf32>
    %70 = arith.addf %54, %59 : vector<64x128xf32>
    %71 = arith.addf %64, %69 : vector<64x128xf32>
    %72 = arith.addf %70, %71 : vector<64x128xf32>
    %cst_13 = arith.constant dense<0.000000e+00> : vector<64xf32>
    %73 = vector.multi_reduction <add>, %72, %cst_13 [1] : vector<64x128xf32> to vector<64xf32>
    %74 = vector.shape_cast %73 : vector<64xf32> to vector<64x1xf32>
    %cst_14 = arith.constant 7.812500e-03 : f32
    %75 = vector.broadcast %cst_14 : f32 to vector<64x1xf32>
    %76 = arith.mulf %74, %75 : vector<64x1xf32>
    %77 = arith.mulf %72, %72 : vector<64x128xf32>
    %cst_15 = arith.constant dense<0.000000e+00> : vector<64xf32>
    %78 = vector.multi_reduction <add>, %77, %cst_15 [1] : vector<64x128xf32> to vector<64xf32>
    %79 = vector.shape_cast %78 : vector<64xf32> to vector<64x1xf32>
    %cst_16 = arith.constant 7.812500e-03 : f32
    %80 = vector.broadcast %cst_16 : f32 to vector<64x1xf32>
    %81 = arith.mulf %79, %80 : vector<64x1xf32>
    %82 = arith.mulf %76, %76 : vector<64x1xf32>
    %83 = arith.subf %81, %82 : vector<64x1xf32>
    %cst_17 = arith.constant 1.000000e-03 : f32
    %84 = vector.broadcast %cst_17 : f32 to vector<64x1xf32>
    %85 = arith.addf %83, %84 : vector<64x1xf32>
    %86 = math.rsqrt %85 : vector<64x1xf32>
    %87 = arith.mulf %86, %86 : vector<64x1xf32>
    %88 = arith.mulf %83, %87 : vector<64x1xf32>
    %89 = arith.addf %49, %88 : vector<64x1xf32>
    %cst_18 = arith.constant 5.000000e-01 : f32
    %90 = vector.broadcast %cst_18 : f32 to vector<64x1xf32>
    %91 = arith.mulf %89, %90 : vector<64x1xf32>
    %cst_19 = arith.constant 9.99999974E-6 : f32
    %92 = vector.broadcast %cst_19 : f32 to vector<64x1xf32>
    %93 = arith.addf %91, %92 : vector<64x1xf32>
    %94 = math.rsqrt %93 : vector<64x1xf32>
    %95 = arith.mulf %7, %94 : vector<64x1xf32>
    %96 = arith.mulf %46, %95 : vector<64x1xf32>
    %97 = arith.mulf %36, %96 : vector<64x1xf32>
    %98 = arith.subf %8, %97 : vector<64x1xf32>
    %99 = vector.broadcast %96 : vector<64x1xf32> to vector<64x128xf32>
    %100 = arith.mulf %32, %99 : vector<64x128xf32>
    %101 = vector.broadcast %98 : vector<64x1xf32> to vector<64x128xf32>
    %102 = arith.addf %100, %101 : vector<64x128xf32>
    %cst_20 = arith.constant 0.000000e+00 : f32
    %103 = vector.broadcast %cst_20 : f32 to vector<64x128xf32>
    %104 = arith.maximumf %102, %103 : vector<64x128xf32>
    %105 = arith.mulf %86, %95 : vector<64x1xf32>
    %106 = arith.mulf %76, %105 : vector<64x1xf32>
    %107 = arith.subf %8, %106 : vector<64x1xf32>
    %108 = vector.broadcast %105 : vector<64x1xf32> to vector<64x128xf32>
    %109 = arith.mulf %72, %108 : vector<64x128xf32>
    %110 = vector.broadcast %107 : vector<64x1xf32> to vector<64x128xf32>
    %111 = arith.addf %109, %110 : vector<64x128xf32>
    %cst_21 = arith.constant 0.000000e+00 : f32
    %112 = vector.broadcast %cst_21 : f32 to vector<64x128xf32>
    %113 = arith.maximumf %111, %112 : vector<64x128xf32>
    %114 = vector.extract_strided_slice %0 {offsets = [64, 0], sizes = [16, 64], strides = [1, 1]} : vector<96x64xf32> to vector<16x64xf32>
    %115 = vector.extract_strided_slice %1 {offsets = [0, 2], sizes = [16, 1], strides = [1, 1]} : vector<64x8xf32> to vector<16x1xf32>
    %116 = vector.extract_strided_slice %1 {offsets = [0, 3], sizes = [16, 1], strides = [1, 1]} : vector<64x8xf32> to vector<16x1xf32>
    %cst_22 = arith.constant 0.000000e+00 : f32
    %117 = vector.broadcast %cst_22 : f32 to vector<16x1xf32>
    %cst_23 = arith.constant dense<0.000000e+00> : vector<16x128xf32>
    %118 = tpu.matmul %114, %104, %cst_23 {dimension_numbers = #tpu.dot_dimension_numbers<[1], [0], [0], [1], [0, 0, 1, 1], [], []>} : vector<16x64xf32>, vector<64x128xf32>, vector<16x128xf32> -> vector<16x128xf32>
    %cst_24 = arith.constant dense<0.000000e+00> : vector<16xf32>
    %119 = vector.multi_reduction <add>, %118, %cst_24 [1] : vector<16x128xf32> to vector<16xf32>
    %120 = vector.shape_cast %119 : vector<16xf32> to vector<16x1xf32>
    %cst_25 = arith.constant 7.812500e-03 : f32
    %121 = vector.broadcast %cst_25 : f32 to vector<16x1xf32>
    %122 = arith.mulf %120, %121 : vector<16x1xf32>
    %123 = arith.mulf %118, %118 : vector<16x128xf32>
    %cst_26 = arith.constant dense<0.000000e+00> : vector<16xf32>
    %124 = vector.multi_reduction <add>, %123, %cst_26 [1] : vector<16x128xf32> to vector<16xf32>
    %125 = vector.shape_cast %124 : vector<16xf32> to vector<16x1xf32>
    %cst_27 = arith.constant 7.812500e-03 : f32
    %126 = vector.broadcast %cst_27 : f32 to vector<16x1xf32>
    %127 = arith.mulf %125, %126 : vector<16x1xf32>
    %128 = arith.mulf %122, %122 : vector<16x1xf32>
    %129 = arith.subf %127, %128 : vector<16x1xf32>
    %cst_28 = arith.constant 1.000000e-03 : f32
    %130 = vector.broadcast %cst_28 : f32 to vector<16x1xf32>
    %131 = arith.addf %129, %130 : vector<16x1xf32>
    %132 = math.rsqrt %131 : vector<16x1xf32>
    %133 = arith.mulf %132, %132 : vector<16x1xf32>
    %134 = arith.mulf %129, %133 : vector<16x1xf32>
    %135 = arith.addf %117, %134 : vector<16x1xf32>
    %cst_29 = arith.constant dense<0.000000e+00> : vector<16x128xf32>
    %136 = tpu.matmul %114, %113, %cst_29 {dimension_numbers = #tpu.dot_dimension_numbers<[1], [0], [0], [1], [0, 0, 1, 1], [], []>} : vector<16x64xf32>, vector<64x128xf32>, vector<16x128xf32> -> vector<16x128xf32>
    %cst_30 = arith.constant dense<0.000000e+00> : vector<16xf32>
    %137 = vector.multi_reduction <add>, %136, %cst_30 [1] : vector<16x128xf32> to vector<16xf32>
    %138 = vector.shape_cast %137 : vector<16xf32> to vector<16x1xf32>
    %cst_31 = arith.constant 7.812500e-03 : f32
    %139 = vector.broadcast %cst_31 : f32 to vector<16x1xf32>
    %140 = arith.mulf %138, %139 : vector<16x1xf32>
    %141 = arith.mulf %136, %136 : vector<16x128xf32>
    %cst_32 = arith.constant dense<0.000000e+00> : vector<16xf32>
    %142 = vector.multi_reduction <add>, %141, %cst_32 [1] : vector<16x128xf32> to vector<16xf32>
    %143 = vector.shape_cast %142 : vector<16xf32> to vector<16x1xf32>
    %cst_33 = arith.constant 7.812500e-03 : f32
    %144 = vector.broadcast %cst_33 : f32 to vector<16x1xf32>
    %145 = arith.mulf %143, %144 : vector<16x1xf32>
    %146 = arith.mulf %140, %140 : vector<16x1xf32>
    %147 = arith.subf %145, %146 : vector<16x1xf32>
    %cst_34 = arith.constant 1.000000e-03 : f32
    %148 = vector.broadcast %cst_34 : f32 to vector<16x1xf32>
    %149 = arith.addf %147, %148 : vector<16x1xf32>
    %150 = math.rsqrt %149 : vector<16x1xf32>
    %151 = arith.mulf %150, %150 : vector<16x1xf32>
    %152 = arith.mulf %147, %151 : vector<16x1xf32>
    %153 = arith.addf %135, %152 : vector<16x1xf32>
    %cst_35 = arith.constant 5.000000e-01 : f32
    %154 = vector.broadcast %cst_35 : f32 to vector<16x1xf32>
    %155 = arith.mulf %153, %154 : vector<16x1xf32>
    %cst_36 = arith.constant 9.99999974E-6 : f32
    %156 = vector.broadcast %cst_36 : f32 to vector<16x1xf32>
    %157 = arith.addf %155, %156 : vector<16x1xf32>
    %158 = math.rsqrt %157 : vector<16x1xf32>
    %159 = arith.mulf %115, %158 : vector<16x1xf32>
    %160 = arith.mulf %132, %159 : vector<16x1xf32>
    %161 = arith.mulf %122, %160 : vector<16x1xf32>
    %162 = arith.subf %116, %161 : vector<16x1xf32>
    %163 = vector.broadcast %160 : vector<16x1xf32> to vector<16x128xf32>
    %164 = arith.mulf %118, %163 : vector<16x128xf32>
    %165 = vector.broadcast %162 : vector<16x1xf32> to vector<16x128xf32>
    %166 = arith.addf %164, %165 : vector<16x128xf32>
    %cst_37 = arith.constant 0.000000e+00 : f32
    %167 = vector.broadcast %cst_37 : f32 to vector<16x128xf32>
    %168 = arith.maximumf %166, %167 : vector<16x128xf32>
    %169 = arith.mulf %150, %159 : vector<16x1xf32>
    %170 = arith.mulf %140, %169 : vector<16x1xf32>
    %171 = arith.subf %116, %170 : vector<16x1xf32>
    %172 = vector.broadcast %169 : vector<16x1xf32> to vector<16x128xf32>
    %173 = arith.mulf %136, %172 : vector<16x128xf32>
    %174 = vector.broadcast %171 : vector<16x1xf32> to vector<16x128xf32>
    %175 = arith.addf %173, %174 : vector<16x128xf32>
    %cst_38 = arith.constant 0.000000e+00 : f32
    %176 = vector.broadcast %cst_38 : f32 to vector<16x128xf32>
    %177 = arith.maximumf %175, %176 : vector<16x128xf32>
    %178 = vector.extract_strided_slice %0 {offsets = [80, 0], sizes = [4, 16], strides = [1, 1]} : vector<96x64xf32> to vector<4x16xf32>
    %179 = vector.extract_strided_slice %1 {offsets = [0, 4], sizes = [4, 1], strides = [1, 1]} : vector<64x8xf32> to vector<4x1xf32>
    %180 = vector.extract_strided_slice %1 {offsets = [0, 5], sizes = [4, 1], strides = [1, 1]} : vector<64x8xf32> to vector<4x1xf32>
    %cst_39 = arith.constant 0.000000e+00 : f32
    %181 = vector.broadcast %cst_39 : f32 to vector<4x1xf32>
    %182 = vector.extract_strided_slice %178 {offsets = [0, 0], sizes = [4, 1], strides = [1, 1]} : vector<4x16xf32> to vector<4x1xf32>
    %183 = vector.extract_strided_slice %168 {offsets = [0, 0], sizes = [1, 128], strides = [1, 1]} : vector<16x128xf32> to vector<1x128xf32>
    %184 = vector.broadcast %182 : vector<4x1xf32> to vector<4x128xf32>
    %185 = vector.broadcast %183 : vector<1x128xf32> to vector<4x128xf32>
    %186 = arith.mulf %184, %185 : vector<4x128xf32>
    %187 = vector.extract_strided_slice %178 {offsets = [0, 1], sizes = [4, 1], strides = [1, 1]} : vector<4x16xf32> to vector<4x1xf32>
    %188 = vector.extract_strided_slice %168 {offsets = [1, 0], sizes = [1, 128], strides = [1, 1]} : vector<16x128xf32> to vector<1x128xf32>
    %189 = vector.broadcast %187 : vector<4x1xf32> to vector<4x128xf32>
    %190 = vector.broadcast %188 : vector<1x128xf32> to vector<4x128xf32>
    %191 = arith.mulf %189, %190 : vector<4x128xf32>
    %192 = vector.extract_strided_slice %178 {offsets = [0, 2], sizes = [4, 1], strides = [1, 1]} : vector<4x16xf32> to vector<4x1xf32>
    %193 = vector.extract_strided_slice %168 {offsets = [2, 0], sizes = [1, 128], strides = [1, 1]} : vector<16x128xf32> to vector<1x128xf32>
    %194 = vector.broadcast %192 : vector<4x1xf32> to vector<4x128xf32>
    %195 = vector.broadcast %193 : vector<1x128xf32> to vector<4x128xf32>
    %196 = arith.mulf %194, %195 : vector<4x128xf32>
    %197 = vector.extract_strided_slice %178 {offsets = [0, 3], sizes = [4, 1], strides = [1, 1]} : vector<4x16xf32> to vector<4x1xf32>
    %198 = vector.extract_strided_slice %168 {offsets = [3, 0], sizes = [1, 128], strides = [1, 1]} : vector<16x128xf32> to vector<1x128xf32>
    %199 = vector.broadcast %197 : vector<4x1xf32> to vector<4x128xf32>
    %200 = vector.broadcast %198 : vector<1x128xf32> to vector<4x128xf32>
    %201 = arith.mulf %199, %200 : vector<4x128xf32>
    %202 = vector.extract_strided_slice %178 {offsets = [0, 4], sizes = [4, 1], strides = [1, 1]} : vector<4x16xf32> to vector<4x1xf32>
    %203 = vector.extract_strided_slice %168 {offsets = [4, 0], sizes = [1, 128], strides = [1, 1]} : vector<16x128xf32> to vector<1x128xf32>
    %204 = vector.broadcast %202 : vector<4x1xf32> to vector<4x128xf32>
    %205 = vector.broadcast %203 : vector<1x128xf32> to vector<4x128xf32>
    %206 = arith.mulf %204, %205 : vector<4x128xf32>
    %207 = arith.addf %186, %206 : vector<4x128xf32>
    %208 = vector.extract_strided_slice %178 {offsets = [0, 5], sizes = [4, 1], strides = [1, 1]} : vector<4x16xf32> to vector<4x1xf32>
    %209 = vector.extract_strided_slice %168 {offsets = [5, 0], sizes = [1, 128], strides = [1, 1]} : vector<16x128xf32> to vector<1x128xf32>
    %210 = vector.broadcast %208 : vector<4x1xf32> to vector<4x128xf32>
    %211 = vector.broadcast %209 : vector<1x128xf32> to vector<4x128xf32>
    %212 = arith.mulf %210, %211 : vector<4x128xf32>
    %213 = arith.addf %191, %212 : vector<4x128xf32>
    %214 = vector.extract_strided_slice %178 {offsets = [0, 6], sizes = [4, 1], strides = [1, 1]} : vector<4x16xf32> to vector<4x1xf32>
    %215 = vector.extract_strided_slice %168 {offsets = [6, 0], sizes = [1, 128], strides = [1, 1]} : vector<16x128xf32> to vector<1x128xf32>
    %216 = vector.broadcast %214 : vector<4x1xf32> to vector<4x128xf32>
    %217 = vector.broadcast %215 : vector<1x128xf32> to vector<4x128xf32>
    %218 = arith.mulf %216, %217 : vector<4x128xf32>
    %219 = arith.addf %196, %218 : vector<4x128xf32>
    %220 = vector.extract_strided_slice %178 {offsets = [0, 7], sizes = [4, 1], strides = [1, 1]} : vector<4x16xf32> to vector<4x1xf32>
    %221 = vector.extract_strided_slice %168 {offsets = [7, 0], sizes = [1, 128], strides = [1, 1]} : vector<16x128xf32> to vector<1x128xf32>
    %222 = vector.broadcast %220 : vector<4x1xf32> to vector<4x128xf32>
    %223 = vector.broadcast %221 : vector<1x128xf32> to vector<4x128xf32>
    %224 = arith.mulf %222, %223 : vector<4x128xf32>
    %225 = arith.addf %201, %224 : vector<4x128xf32>
    %226 = vector.extract_strided_slice %178 {offsets = [0, 8], sizes = [4, 1], strides = [1, 1]} : vector<4x16xf32> to vector<4x1xf32>
    %227 = vector.extract_strided_slice %168 {offsets = [8, 0], sizes = [1, 128], strides = [1, 1]} : vector<16x128xf32> to vector<1x128xf32>
    %228 = vector.broadcast %226 : vector<4x1xf32> to vector<4x128xf32>
    %229 = vector.broadcast %227 : vector<1x128xf32> to vector<4x128xf32>
    %230 = arith.mulf %228, %229 : vector<4x128xf32>
    %231 = arith.addf %207, %230 : vector<4x128xf32>
    %232 = vector.extract_strided_slice %178 {offsets = [0, 9], sizes = [4, 1], strides = [1, 1]} : vector<4x16xf32> to vector<4x1xf32>
    %233 = vector.extract_strided_slice %168 {offsets = [9, 0], sizes = [1, 128], strides = [1, 1]} : vector<16x128xf32> to vector<1x128xf32>
    %234 = vector.broadcast %232 : vector<4x1xf32> to vector<4x128xf32>
    %235 = vector.broadcast %233 : vector<1x128xf32> to vector<4x128xf32>
    %236 = arith.mulf %234, %235 : vector<4x128xf32>
    %237 = arith.addf %213, %236 : vector<4x128xf32>
    %238 = vector.extract_strided_slice %178 {offsets = [0, 10], sizes = [4, 1], strides = [1, 1]} : vector<4x16xf32> to vector<4x1xf32>
    %239 = vector.extract_strided_slice %168 {offsets = [10, 0], sizes = [1, 128], strides = [1, 1]} : vector<16x128xf32> to vector<1x128xf32>
    %240 = vector.broadcast %238 : vector<4x1xf32> to vector<4x128xf32>
    %241 = vector.broadcast %239 : vector<1x128xf32> to vector<4x128xf32>
    %242 = arith.mulf %240, %241 : vector<4x128xf32>
    %243 = arith.addf %219, %242 : vector<4x128xf32>
    %244 = vector.extract_strided_slice %178 {offsets = [0, 11], sizes = [4, 1], strides = [1, 1]} : vector<4x16xf32> to vector<4x1xf32>
    %245 = vector.extract_strided_slice %168 {offsets = [11, 0], sizes = [1, 128], strides = [1, 1]} : vector<16x128xf32> to vector<1x128xf32>
    %246 = vector.broadcast %244 : vector<4x1xf32> to vector<4x128xf32>
    %247 = vector.broadcast %245 : vector<1x128xf32> to vector<4x128xf32>
    %248 = arith.mulf %246, %247 : vector<4x128xf32>
    %249 = arith.addf %225, %248 : vector<4x128xf32>
    %250 = vector.extract_strided_slice %178 {offsets = [0, 12], sizes = [4, 1], strides = [1, 1]} : vector<4x16xf32> to vector<4x1xf32>
    %251 = vector.extract_strided_slice %168 {offsets = [12, 0], sizes = [1, 128], strides = [1, 1]} : vector<16x128xf32> to vector<1x128xf32>
    %252 = vector.broadcast %250 : vector<4x1xf32> to vector<4x128xf32>
    %253 = vector.broadcast %251 : vector<1x128xf32> to vector<4x128xf32>
    %254 = arith.mulf %252, %253 : vector<4x128xf32>
    %255 = arith.addf %231, %254 : vector<4x128xf32>
    %256 = vector.extract_strided_slice %178 {offsets = [0, 13], sizes = [4, 1], strides = [1, 1]} : vector<4x16xf32> to vector<4x1xf32>
    %257 = vector.extract_strided_slice %168 {offsets = [13, 0], sizes = [1, 128], strides = [1, 1]} : vector<16x128xf32> to vector<1x128xf32>
    %258 = vector.broadcast %256 : vector<4x1xf32> to vector<4x128xf32>
    %259 = vector.broadcast %257 : vector<1x128xf32> to vector<4x128xf32>
    %260 = arith.mulf %258, %259 : vector<4x128xf32>
    %261 = arith.addf %237, %260 : vector<4x128xf32>
    %262 = vector.extract_strided_slice %178 {offsets = [0, 14], sizes = [4, 1], strides = [1, 1]} : vector<4x16xf32> to vector<4x1xf32>
    %263 = vector.extract_strided_slice %168 {offsets = [14, 0], sizes = [1, 128], strides = [1, 1]} : vector<16x128xf32> to vector<1x128xf32>
    %264 = vector.broadcast %262 : vector<4x1xf32> to vector<4x128xf32>
    %265 = vector.broadcast %263 : vector<1x128xf32> to vector<4x128xf32>
    %266 = arith.mulf %264, %265 : vector<4x128xf32>
    %267 = arith.addf %243, %266 : vector<4x128xf32>
    %268 = vector.extract_strided_slice %178 {offsets = [0, 15], sizes = [4, 1], strides = [1, 1]} : vector<4x16xf32> to vector<4x1xf32>
    %269 = vector.extract_strided_slice %168 {offsets = [15, 0], sizes = [1, 128], strides = [1, 1]} : vector<16x128xf32> to vector<1x128xf32>
    %270 = vector.broadcast %268 : vector<4x1xf32> to vector<4x128xf32>
    %271 = vector.broadcast %269 : vector<1x128xf32> to vector<4x128xf32>
    %272 = arith.mulf %270, %271 : vector<4x128xf32>
    %273 = arith.addf %249, %272 : vector<4x128xf32>
    %274 = arith.addf %255, %261 : vector<4x128xf32>
    %275 = arith.addf %267, %273 : vector<4x128xf32>
    %276 = arith.addf %274, %275 : vector<4x128xf32>
    %cst_40 = arith.constant dense<0.000000e+00> : vector<4xf32>
    %277 = vector.multi_reduction <add>, %276, %cst_40 [1] : vector<4x128xf32> to vector<4xf32>
    %278 = vector.shape_cast %277 : vector<4xf32> to vector<4x1xf32>
    %cst_41 = arith.constant 7.812500e-03 : f32
    %279 = vector.broadcast %cst_41 : f32 to vector<4x1xf32>
    %280 = arith.mulf %278, %279 : vector<4x1xf32>
    %281 = arith.mulf %276, %276 : vector<4x128xf32>
    %cst_42 = arith.constant dense<0.000000e+00> : vector<4xf32>
    %282 = vector.multi_reduction <add>, %281, %cst_42 [1] : vector<4x128xf32> to vector<4xf32>
    %283 = vector.shape_cast %282 : vector<4xf32> to vector<4x1xf32>
    %cst_43 = arith.constant 7.812500e-03 : f32
    %284 = vector.broadcast %cst_43 : f32 to vector<4x1xf32>
    %285 = arith.mulf %283, %284 : vector<4x1xf32>
    %286 = arith.mulf %280, %280 : vector<4x1xf32>
    %287 = arith.subf %285, %286 : vector<4x1xf32>
    %cst_44 = arith.constant 1.000000e-03 : f32
    %288 = vector.broadcast %cst_44 : f32 to vector<4x1xf32>
    %289 = arith.addf %287, %288 : vector<4x1xf32>
    %290 = math.rsqrt %289 : vector<4x1xf32>
    %291 = arith.mulf %290, %290 : vector<4x1xf32>
    %292 = arith.mulf %287, %291 : vector<4x1xf32>
    %293 = arith.addf %181, %292 : vector<4x1xf32>
    %294 = vector.extract_strided_slice %178 {offsets = [0, 0], sizes = [4, 1], strides = [1, 1]} : vector<4x16xf32> to vector<4x1xf32>
    %295 = vector.extract_strided_slice %177 {offsets = [0, 0], sizes = [1, 128], strides = [1, 1]} : vector<16x128xf32> to vector<1x128xf32>
    %296 = vector.broadcast %294 : vector<4x1xf32> to vector<4x128xf32>
    %297 = vector.broadcast %295 : vector<1x128xf32> to vector<4x128xf32>
    %298 = arith.mulf %296, %297 : vector<4x128xf32>
    %299 = vector.extract_strided_slice %178 {offsets = [0, 1], sizes = [4, 1], strides = [1, 1]} : vector<4x16xf32> to vector<4x1xf32>
    %300 = vector.extract_strided_slice %177 {offsets = [1, 0], sizes = [1, 128], strides = [1, 1]} : vector<16x128xf32> to vector<1x128xf32>
    %301 = vector.broadcast %299 : vector<4x1xf32> to vector<4x128xf32>
    %302 = vector.broadcast %300 : vector<1x128xf32> to vector<4x128xf32>
    %303 = arith.mulf %301, %302 : vector<4x128xf32>
    %304 = vector.extract_strided_slice %178 {offsets = [0, 2], sizes = [4, 1], strides = [1, 1]} : vector<4x16xf32> to vector<4x1xf32>
    %305 = vector.extract_strided_slice %177 {offsets = [2, 0], sizes = [1, 128], strides = [1, 1]} : vector<16x128xf32> to vector<1x128xf32>
    %306 = vector.broadcast %304 : vector<4x1xf32> to vector<4x128xf32>
    %307 = vector.broadcast %305 : vector<1x128xf32> to vector<4x128xf32>
    %308 = arith.mulf %306, %307 : vector<4x128xf32>
    %309 = vector.extract_strided_slice %178 {offsets = [0, 3], sizes = [4, 1], strides = [1, 1]} : vector<4x16xf32> to vector<4x1xf32>
    %310 = vector.extract_strided_slice %177 {offsets = [3, 0], sizes = [1, 128], strides = [1, 1]} : vector<16x128xf32> to vector<1x128xf32>
    %311 = vector.broadcast %309 : vector<4x1xf32> to vector<4x128xf32>
    %312 = vector.broadcast %310 : vector<1x128xf32> to vector<4x128xf32>
    %313 = arith.mulf %311, %312 : vector<4x128xf32>
    %314 = vector.extract_strided_slice %178 {offsets = [0, 4], sizes = [4, 1], strides = [1, 1]} : vector<4x16xf32> to vector<4x1xf32>
    %315 = vector.extract_strided_slice %177 {offsets = [4, 0], sizes = [1, 128], strides = [1, 1]} : vector<16x128xf32> to vector<1x128xf32>
    %316 = vector.broadcast %314 : vector<4x1xf32> to vector<4x128xf32>
    %317 = vector.broadcast %315 : vector<1x128xf32> to vector<4x128xf32>
    %318 = arith.mulf %316, %317 : vector<4x128xf32>
    %319 = arith.addf %298, %318 : vector<4x128xf32>
    %320 = vector.extract_strided_slice %178 {offsets = [0, 5], sizes = [4, 1], strides = [1, 1]} : vector<4x16xf32> to vector<4x1xf32>
    %321 = vector.extract_strided_slice %177 {offsets = [5, 0], sizes = [1, 128], strides = [1, 1]} : vector<16x128xf32> to vector<1x128xf32>
    %322 = vector.broadcast %320 : vector<4x1xf32> to vector<4x128xf32>
    %323 = vector.broadcast %321 : vector<1x128xf32> to vector<4x128xf32>
    %324 = arith.mulf %322, %323 : vector<4x128xf32>
    %325 = arith.addf %303, %324 : vector<4x128xf32>
    %326 = vector.extract_strided_slice %178 {offsets = [0, 6], sizes = [4, 1], strides = [1, 1]} : vector<4x16xf32> to vector<4x1xf32>
    %327 = vector.extract_strided_slice %177 {offsets = [6, 0], sizes = [1, 128], strides = [1, 1]} : vector<16x128xf32> to vector<1x128xf32>
    %328 = vector.broadcast %326 : vector<4x1xf32> to vector<4x128xf32>
    %329 = vector.broadcast %327 : vector<1x128xf32> to vector<4x128xf32>
    %330 = arith.mulf %328, %329 : vector<4x128xf32>
    %331 = arith.addf %308, %330 : vector<4x128xf32>
    %332 = vector.extract_strided_slice %178 {offsets = [0, 7], sizes = [4, 1], strides = [1, 1]} : vector<4x16xf32> to vector<4x1xf32>
    %333 = vector.extract_strided_slice %177 {offsets = [7, 0], sizes = [1, 128], strides = [1, 1]} : vector<16x128xf32> to vector<1x128xf32>
    %334 = vector.broadcast %332 : vector<4x1xf32> to vector<4x128xf32>
    %335 = vector.broadcast %333 : vector<1x128xf32> to vector<4x128xf32>
    %336 = arith.mulf %334, %335 : vector<4x128xf32>
    %337 = arith.addf %313, %336 : vector<4x128xf32>
    %338 = vector.extract_strided_slice %178 {offsets = [0, 8], sizes = [4, 1], strides = [1, 1]} : vector<4x16xf32> to vector<4x1xf32>
    %339 = vector.extract_strided_slice %177 {offsets = [8, 0], sizes = [1, 128], strides = [1, 1]} : vector<16x128xf32> to vector<1x128xf32>
    %340 = vector.broadcast %338 : vector<4x1xf32> to vector<4x128xf32>
    %341 = vector.broadcast %339 : vector<1x128xf32> to vector<4x128xf32>
    %342 = arith.mulf %340, %341 : vector<4x128xf32>
    %343 = arith.addf %319, %342 : vector<4x128xf32>
    %344 = vector.extract_strided_slice %178 {offsets = [0, 9], sizes = [4, 1], strides = [1, 1]} : vector<4x16xf32> to vector<4x1xf32>
    %345 = vector.extract_strided_slice %177 {offsets = [9, 0], sizes = [1, 128], strides = [1, 1]} : vector<16x128xf32> to vector<1x128xf32>
    %346 = vector.broadcast %344 : vector<4x1xf32> to vector<4x128xf32>
    %347 = vector.broadcast %345 : vector<1x128xf32> to vector<4x128xf32>
    %348 = arith.mulf %346, %347 : vector<4x128xf32>
    %349 = arith.addf %325, %348 : vector<4x128xf32>
    %350 = vector.extract_strided_slice %178 {offsets = [0, 10], sizes = [4, 1], strides = [1, 1]} : vector<4x16xf32> to vector<4x1xf32>
    %351 = vector.extract_strided_slice %177 {offsets = [10, 0], sizes = [1, 128], strides = [1, 1]} : vector<16x128xf32> to vector<1x128xf32>
    %352 = vector.broadcast %350 : vector<4x1xf32> to vector<4x128xf32>
    %353 = vector.broadcast %351 : vector<1x128xf32> to vector<4x128xf32>
    %354 = arith.mulf %352, %353 : vector<4x128xf32>
    %355 = arith.addf %331, %354 : vector<4x128xf32>
    %356 = vector.extract_strided_slice %178 {offsets = [0, 11], sizes = [4, 1], strides = [1, 1]} : vector<4x16xf32> to vector<4x1xf32>
    %357 = vector.extract_strided_slice %177 {offsets = [11, 0], sizes = [1, 128], strides = [1, 1]} : vector<16x128xf32> to vector<1x128xf32>
    %358 = vector.broadcast %356 : vector<4x1xf32> to vector<4x128xf32>
    %359 = vector.broadcast %357 : vector<1x128xf32> to vector<4x128xf32>
    %360 = arith.mulf %358, %359 : vector<4x128xf32>
    %361 = arith.addf %337, %360 : vector<4x128xf32>
    %362 = vector.extract_strided_slice %178 {offsets = [0, 12], sizes = [4, 1], strides = [1, 1]} : vector<4x16xf32> to vector<4x1xf32>
    %363 = vector.extract_strided_slice %177 {offsets = [12, 0], sizes = [1, 128], strides = [1, 1]} : vector<16x128xf32> to vector<1x128xf32>
    %364 = vector.broadcast %362 : vector<4x1xf32> to vector<4x128xf32>
    %365 = vector.broadcast %363 : vector<1x128xf32> to vector<4x128xf32>
    %366 = arith.mulf %364, %365 : vector<4x128xf32>
    %367 = arith.addf %343, %366 : vector<4x128xf32>
    %368 = vector.extract_strided_slice %178 {offsets = [0, 13], sizes = [4, 1], strides = [1, 1]} : vector<4x16xf32> to vector<4x1xf32>
    %369 = vector.extract_strided_slice %177 {offsets = [13, 0], sizes = [1, 128], strides = [1, 1]} : vector<16x128xf32> to vector<1x128xf32>
    %370 = vector.broadcast %368 : vector<4x1xf32> to vector<4x128xf32>
    %371 = vector.broadcast %369 : vector<1x128xf32> to vector<4x128xf32>
    %372 = arith.mulf %370, %371 : vector<4x128xf32>
    %373 = arith.addf %349, %372 : vector<4x128xf32>
    %374 = vector.extract_strided_slice %178 {offsets = [0, 14], sizes = [4, 1], strides = [1, 1]} : vector<4x16xf32> to vector<4x1xf32>
    %375 = vector.extract_strided_slice %177 {offsets = [14, 0], sizes = [1, 128], strides = [1, 1]} : vector<16x128xf32> to vector<1x128xf32>
    %376 = vector.broadcast %374 : vector<4x1xf32> to vector<4x128xf32>
    %377 = vector.broadcast %375 : vector<1x128xf32> to vector<4x128xf32>
    %378 = arith.mulf %376, %377 : vector<4x128xf32>
    %379 = arith.addf %355, %378 : vector<4x128xf32>
    %380 = vector.extract_strided_slice %178 {offsets = [0, 15], sizes = [4, 1], strides = [1, 1]} : vector<4x16xf32> to vector<4x1xf32>
    %381 = vector.extract_strided_slice %177 {offsets = [15, 0], sizes = [1, 128], strides = [1, 1]} : vector<16x128xf32> to vector<1x128xf32>
    %382 = vector.broadcast %380 : vector<4x1xf32> to vector<4x128xf32>
    %383 = vector.broadcast %381 : vector<1x128xf32> to vector<4x128xf32>
    %384 = arith.mulf %382, %383 : vector<4x128xf32>
    %385 = arith.addf %361, %384 : vector<4x128xf32>
    %386 = arith.addf %367, %373 : vector<4x128xf32>
    %387 = arith.addf %379, %385 : vector<4x128xf32>
    %388 = arith.addf %386, %387 : vector<4x128xf32>
    %cst_45 = arith.constant dense<0.000000e+00> : vector<4xf32>
    %389 = vector.multi_reduction <add>, %388, %cst_45 [1] : vector<4x128xf32> to vector<4xf32>
    %390 = vector.shape_cast %389 : vector<4xf32> to vector<4x1xf32>
    %cst_46 = arith.constant 7.812500e-03 : f32
    %391 = vector.broadcast %cst_46 : f32 to vector<4x1xf32>
    %392 = arith.mulf %390, %391 : vector<4x1xf32>
    %393 = arith.mulf %388, %388 : vector<4x128xf32>
    %cst_47 = arith.constant dense<0.000000e+00> : vector<4xf32>
    %394 = vector.multi_reduction <add>, %393, %cst_47 [1] : vector<4x128xf32> to vector<4xf32>
    %395 = vector.shape_cast %394 : vector<4xf32> to vector<4x1xf32>
    %cst_48 = arith.constant 7.812500e-03 : f32
    %396 = vector.broadcast %cst_48 : f32 to vector<4x1xf32>
    %397 = arith.mulf %395, %396 : vector<4x1xf32>
    %398 = arith.mulf %392, %392 : vector<4x1xf32>
    %399 = arith.subf %397, %398 : vector<4x1xf32>
    %cst_49 = arith.constant 1.000000e-03 : f32
    %400 = vector.broadcast %cst_49 : f32 to vector<4x1xf32>
    %401 = arith.addf %399, %400 : vector<4x1xf32>
    %402 = math.rsqrt %401 : vector<4x1xf32>
    %403 = arith.mulf %402, %402 : vector<4x1xf32>
    %404 = arith.mulf %399, %403 : vector<4x1xf32>
    %405 = arith.addf %293, %404 : vector<4x1xf32>
    %cst_50 = arith.constant 5.000000e-01 : f32
    %406 = vector.broadcast %cst_50 : f32 to vector<4x1xf32>
    %407 = arith.mulf %405, %406 : vector<4x1xf32>
    %cst_51 = arith.constant 9.99999974E-6 : f32
    %408 = vector.broadcast %cst_51 : f32 to vector<4x1xf32>
    %409 = arith.addf %407, %408 : vector<4x1xf32>
    %410 = math.rsqrt %409 : vector<4x1xf32>
    %411 = arith.mulf %179, %410 : vector<4x1xf32>
    %412 = arith.mulf %290, %411 : vector<4x1xf32>
    %413 = arith.mulf %280, %412 : vector<4x1xf32>
    %414 = arith.subf %180, %413 : vector<4x1xf32>
    %415 = vector.broadcast %412 : vector<4x1xf32> to vector<4x128xf32>
    %416 = arith.mulf %276, %415 : vector<4x128xf32>
    %417 = vector.broadcast %414 : vector<4x1xf32> to vector<4x128xf32>
    %418 = arith.addf %416, %417 : vector<4x128xf32>
    %cst_52 = arith.constant 0.000000e+00 : f32
    %419 = vector.broadcast %cst_52 : f32 to vector<4x128xf32>
    %420 = arith.maximumf %418, %419 : vector<4x128xf32>
    %421 = arith.mulf %402, %411 : vector<4x1xf32>
    %422 = arith.mulf %392, %421 : vector<4x1xf32>
    %423 = arith.subf %180, %422 : vector<4x1xf32>
    %424 = vector.broadcast %421 : vector<4x1xf32> to vector<4x128xf32>
    %425 = arith.mulf %388, %424 : vector<4x128xf32>
    %426 = vector.broadcast %423 : vector<4x1xf32> to vector<4x128xf32>
    %427 = arith.addf %425, %426 : vector<4x128xf32>
    %cst_53 = arith.constant 0.000000e+00 : f32
    %428 = vector.broadcast %cst_53 : f32 to vector<4x128xf32>
    %429 = arith.maximumf %427, %428 : vector<4x128xf32>
    %430 = vector.extract_strided_slice %0 {offsets = [88, 0], sizes = [1, 4], strides = [1, 1]} : vector<96x64xf32> to vector<1x4xf32>
    %431 = vector.extract_strided_slice %1 {offsets = [0, 6], sizes = [1, 1], strides = [1, 1]} : vector<64x8xf32> to vector<1x1xf32>
    %432 = vector.extract_strided_slice %430 {offsets = [0, 0], sizes = [1, 1], strides = [1, 1]} : vector<1x4xf32> to vector<1x1xf32>
    %433 = vector.extract_strided_slice %420 {offsets = [0, 0], sizes = [1, 128], strides = [1, 1]} : vector<4x128xf32> to vector<1x128xf32>
    %434 = vector.broadcast %432 : vector<1x1xf32> to vector<1x128xf32>
    %435 = arith.mulf %434, %433 : vector<1x128xf32>
    %436 = vector.extract_strided_slice %430 {offsets = [0, 1], sizes = [1, 1], strides = [1, 1]} : vector<1x4xf32> to vector<1x1xf32>
    %437 = vector.extract_strided_slice %420 {offsets = [1, 0], sizes = [1, 128], strides = [1, 1]} : vector<4x128xf32> to vector<1x128xf32>
    %438 = vector.broadcast %436 : vector<1x1xf32> to vector<1x128xf32>
    %439 = arith.mulf %438, %437 : vector<1x128xf32>
    %440 = vector.extract_strided_slice %430 {offsets = [0, 2], sizes = [1, 1], strides = [1, 1]} : vector<1x4xf32> to vector<1x1xf32>
    %441 = vector.extract_strided_slice %420 {offsets = [2, 0], sizes = [1, 128], strides = [1, 1]} : vector<4x128xf32> to vector<1x128xf32>
    %442 = vector.broadcast %440 : vector<1x1xf32> to vector<1x128xf32>
    %443 = arith.mulf %442, %441 : vector<1x128xf32>
    %444 = vector.extract_strided_slice %430 {offsets = [0, 3], sizes = [1, 1], strides = [1, 1]} : vector<1x4xf32> to vector<1x1xf32>
    %445 = vector.extract_strided_slice %420 {offsets = [3, 0], sizes = [1, 128], strides = [1, 1]} : vector<4x128xf32> to vector<1x128xf32>
    %446 = vector.broadcast %444 : vector<1x1xf32> to vector<1x128xf32>
    %447 = arith.mulf %446, %445 : vector<1x128xf32>
    %448 = arith.addf %435, %439 : vector<1x128xf32>
    %449 = arith.addf %443, %447 : vector<1x128xf32>
    %450 = arith.addf %448, %449 : vector<1x128xf32>
    %451 = vector.broadcast %431 : vector<1x1xf32> to vector<1x128xf32>
    %452 = arith.addf %450, %451 : vector<1x128xf32>
    %c0_54 = arith.constant 0 : index
    %c0_55 = arith.constant 0 : index
    %c0_56 = arith.constant 0 : index
    %453 = vector.load %arg4[%c0_54, %c0_55, %c0_56] : memref<2x1x128xf32, #tpu.memory_space<vmem>>, vector<1x1x128xf32>
    %454 = vector.shape_cast %453 : vector<1x1x128xf32> to vector<1x128xf32>
    %455 = vector.shape_cast %452 : vector<1x128xf32> to vector<1x1x128xf32>
    tpu.vector_store %arg4[%c0_54, %c0_55, %c0_56], %455 {strides = array<i32>} : memref<2x1x128xf32, #tpu.memory_space<vmem>>, vector<1x1x128xf32>,
    %456 = vector.extract_strided_slice %430 {offsets = [0, 0], sizes = [1, 1], strides = [1, 1]} : vector<1x4xf32> to vector<1x1xf32>
    %457 = vector.extract_strided_slice %429 {offsets = [0, 0], sizes = [1, 128], strides = [1, 1]} : vector<4x128xf32> to vector<1x128xf32>
    %458 = vector.broadcast %456 : vector<1x1xf32> to vector<1x128xf32>
    %459 = arith.mulf %458, %457 : vector<1x128xf32>
    %460 = vector.extract_strided_slice %430 {offsets = [0, 1], sizes = [1, 1], strides = [1, 1]} : vector<1x4xf32> to vector<1x1xf32>
    %461 = vector.extract_strided_slice %429 {offsets = [1, 0], sizes = [1, 128], strides = [1, 1]} : vector<4x128xf32> to vector<1x128xf32>
    %462 = vector.broadcast %460 : vector<1x1xf32> to vector<1x128xf32>
    %463 = arith.mulf %462, %461 : vector<1x128xf32>
    %464 = vector.extract_strided_slice %430 {offsets = [0, 2], sizes = [1, 1], strides = [1, 1]} : vector<1x4xf32> to vector<1x1xf32>
    %465 = vector.extract_strided_slice %429 {offsets = [2, 0], sizes = [1, 128], strides = [1, 1]} : vector<4x128xf32> to vector<1x128xf32>
    %466 = vector.broadcast %464 : vector<1x1xf32> to vector<1x128xf32>
    %467 = arith.mulf %466, %465 : vector<1x128xf32>
    %468 = vector.extract_strided_slice %430 {offsets = [0, 3], sizes = [1, 1], strides = [1, 1]} : vector<1x4xf32> to vector<1x1xf32>
    %469 = vector.extract_strided_slice %429 {offsets = [3, 0], sizes = [1, 128], strides = [1, 1]} : vector<4x128xf32> to vector<1x128xf32>
    %470 = vector.broadcast %468 : vector<1x1xf32> to vector<1x128xf32>
    %471 = arith.mulf %470, %469 : vector<1x128xf32>
    %472 = arith.addf %459, %463 : vector<1x128xf32>
    %473 = arith.addf %467, %471 : vector<1x128xf32>
    %474 = arith.addf %472, %473 : vector<1x128xf32>
    %475 = vector.broadcast %431 : vector<1x1xf32> to vector<1x128xf32>
    %476 = arith.addf %474, %475 : vector<1x128xf32>
    %c1_57 = arith.constant 1 : index
    %c0_58 = arith.constant 0 : index
    %c0_59 = arith.constant 0 : index
    %477 = vector.load %arg4[%c1_57, %c0_58, %c0_59] : memref<2x1x128xf32, #tpu.memory_space<vmem>>, vector<1x1x128xf32>
    %478 = vector.shape_cast %477 : vector<1x1x128xf32> to vector<1x128xf32>
    %479 = vector.shape_cast %476 : vector<1x128xf32> to vector<1x1x128xf32>
    tpu.vector_store %arg4[%c1_57, %c0_58, %c0_59], %479 {strides = array<i32>} : memref<2x1x128xf32, #tpu.memory_space<vmem>>, vector<1x1x128xf32>,
    return
  }
  func.func @transform_0(%arg0: i32) -> (i32, i32, i32) {
    %c0_i32 = arith.constant 0 : i32
    %c0_i32_0 = arith.constant 0 : i32
    %c0_i32_1 = arith.constant 0 : i32
    %c0_i32_2 = arith.constant 0 : i32
    return %c0_i32, %c0_i32_0, %c0_i32_1 : i32, i32, i32
  }
  func.func @transform_1(%arg0: i32) -> (i32, i32) {
    %c0_i32 = arith.constant 0 : i32
    %c0_i32_0 = arith.constant 0 : i32
    %c0_i32_1 = arith.constant 0 : i32
    return %c0_i32, %c0_i32_0 : i32, i32
  }
  func.func @transform_2(%arg0: i32) -> (i32, i32) {
    %c0_i32 = arith.constant 0 : i32
    %c0_i32_0 = arith.constant 0 : i32
    %c0_i32_1 = arith.constant 0 : i32
    return %c0_i32, %c0_i32_0 : i32, i32
  }
  func.func @transform_3(%arg0: i32) -> (i32, i32, i32) {
    %c0_i32 = arith.constant 0 : i32
    %c0_i32_0 = arith.constant 0 : i32
    %c0_i32_1 = arith.constant 0 : i32
    %c0_i32_2 = arith.constant 0 : i32
    return %c0_i32, %c0_i32_0, %c0_i32_1 : i32, i32, i32
  }
}

</mosaic_0001>

<llo_original>
// kernel: tpu_custom_call.1
$region0: #{tpu_custom_call.1}
  #allocation0 [shape = 'u32[]', space=smem, size = 0x4, offset = 0x4, fixed_abs, tag = 'smem constant byte address 0x4 - core index']
  #allocation1 [shape = 'u32[144,128]{1,0:T(1,128)}', space=vmem, size = 0x12000, scoped, tag = 'internal scratch']
  %s0 = inlined_call_operand.vmem [shape: f32[2,4,128], index: 0, kind: input, shape index: {}]
  %s1 = inlined_call_operand.vmem [shape: f32[96,64], index: 1, kind: input, shape index: {}]
  %s2 = inlined_call_operand.vmem [shape: f32[64,8], index: 2, kind: input, shape index: {}]
  %s3 = inlined_call_operand.hbm [shape: f32[2,1,128], index: 3, kind: output, shape index: {}]
  %s4 = sld [smem:[#allocation0]]
  $region22: #{tpu_custom_call.1} parent=0
    _
  %s6 = ssub.s32 1, %s4
  %s7 = scalar_select 0, %s6, %s4
  $region1: #{tpu_custom_call.1} parent=0
    #allocation2 [shape = 'u8[1024]{0}', space=vmem, size = 0x400, scoped, tag = 'output window, operand 0, single buffered']
    #allocation3 [shape = 's32[1]{0}', space=sflag, size = 0x4, scoped, tag = 'scoped memory for tpu_custom_call.1']
    %8 = vsyncpa [#allocation3], 0
    // Predicated region
    $region2: #{tpu_custom_call.1} parent=1 // pred_check
      _
    $region3: #{tpu_custom_call.1} parent=1 // pred_check_branch
      %10 = sbr.rel (0) target = $region5
    $region4: #{tpu_custom_call.1} parent=1 // pred_region
      _
    $region5: #{tpu_custom_call.1} parent=1 // pred_fallthru
      _
    // Predicated region
    $region6: #{tpu_custom_call.1} parent=1 // pred_check
      _
    $region7: #{tpu_custom_call.1} parent=1 // pred_check_branch
      %12 = sbr.rel (0) target = $region9
    $region8: #{tpu_custom_call.1} parent=1 // pred_region
      _
    $region9: #{tpu_custom_call.1} parent=1 // pred_fallthru
      _
    // Predicated region
    $region10: #{tpu_custom_call.1} parent=1 // pred_check
      _
    $region11: #{tpu_custom_call.1} parent=1 // pred_check_branch
      %14 = sbr.rel (0) target = $region13
    $region12: #{tpu_custom_call.1} parent=1 // pred_region
      _
    $region13: #{tpu_custom_call.1} parent=1 // pred_fallthru
      _
    %v15 = vld [vmem:[%s1] sm:$0xff]
    %v16 = vld [vmem:[%s1 + $0x8] sm:$0xff]
    %v17 = vld [vmem:[%s1 + $0x10] sm:$0xff]
    %v18 = vld [vmem:[%s1 + $0x18] sm:$0xff]
    %v19 = vld [vmem:[%s1 + $0x20] sm:$0xff]
    %v20 = vld [vmem:[%s1 + $0x28] sm:$0xff]
    %v21 = vld [vmem:[%s1 + $0x30] sm:$0xff]
    %v22 = vld [vmem:[%s1 + $0x38] sm:$0xff]
    %v23 = vld [vmem:[%s1 + $0x40] sm:$0xff]
    %v24 = vld [vmem:[%s1 + $0x48] sm:$0xff]
    %v25 = vld [vmem:[%s1 + $0x50] sm:$0xff]
    %v26 = vld [vmem:[%s1 + $0x58] sm:$0xff]
    %v27 = vld [vmem:[%s2] sm:$0xff]
    %v28 = vld [vmem:[%s2 + $0x8] sm:$0xff]
    %v29 = vld [vmem:[%s2 + $0x10] sm:$0xff]
    %v30 = vld [vmem:[%s2 + $0x18] sm:$0xff]
    %v31 = vld [vmem:[%s2 + $0x20] sm:$0xff]
    %v32 = vld [vmem:[%s2 + $0x28] sm:$0xff]
    %v33 = vld [vmem:[%s2 + $0x30] sm:$0xff]
    %v34 = vld [vmem:[%s2 + $0x38] sm:$0xff]
    %v35 = vld [vmem:[%s0] sm:$0xf]
    %s36 = scalar_lea.vmem %s0, 4
    %v37 = vld [vmem:[%s36] sm:$0xf]
    %39 = vset.pattern.permute.xlu0 0
    %40 = vperm.xlu0 %39, %v15
    %v41 = vpop.permute.xlu0 %40
    %44 = vset.pattern.permute.xlu0 0
    %45 = vperm.xlu0 %44, %v16
    %v46 = vpop.permute.xlu0 %45
    %49 = vset.pattern.permute.xlu0 0
    %50 = vperm.xlu0 %49, %v17
    %v51 = vpop.permute.xlu0 %50
    %54 = vset.pattern.permute.xlu0 0
    %55 = vperm.xlu0 %54, %v18
    %v56 = vpop.permute.xlu0 %55
    %59 = vset.pattern.permute.xlu0 0
    %60 = vperm.xlu0 %59, %v19
    %v61 = vpop.permute.xlu0 %60
    %64 = vset.pattern.permute.xlu0 0
    %65 = vperm.xlu0 %64, %v20
    %v66 = vpop.permute.xlu0 %65
    %69 = vset.pattern.permute.xlu0 0
    %70 = vperm.xlu0 %69, %v21
    %v71 = vpop.permute.xlu0 %70
    %74 = vset.pattern.permute.xlu0 0
    %75 = vperm.xlu0 %74, %v22
    %v76 = vpop.permute.xlu0 %75
    %v78 = vlaneseq
    %v79 = vshrl.u32 %v78, 7
    %v80 = vsub.s32 0, %v79
    %v81 = vrot.slane %v35, %v80
    %v82 = vmul.f32 %v41, %v81
    %v83 = vmul.f32 %v46, %v81
    %v84 = vmul.f32 %v51, %v81
    %v85 = vmul.f32 %v56, %v81
    %v86 = vmul.f32 %v61, %v81
    %v87 = vmul.f32 %v66, %v81
    %v88 = vmul.f32 %v71, %v81
    %v89 = vmul.f32 %v76, %v81
    %90 = vset.pattern.permute.xlu0 1
    %91 = vperm.xlu0 %90, %v15
    %v92 = vpop.permute.xlu0 %91
    %94 = vset.pattern.permute.xlu0 1
    %95 = vperm.xlu0 %94, %v16
    %v96 = vpop.permute.xlu0 %95
    %98 = vset.pattern.permute.xlu0 1
    %99 = vperm.xlu0 %98, %v17
    %v100 = vpop.permute.xlu0 %99
    %102 = vset.pattern.permute.xlu0 1
    %103 = vperm.xlu0 %102, %v18
    %v104 = vpop.permute.xlu0 %103
    %106 = vset.pattern.permute.xlu0 1
    %107 = vperm.xlu0 %106, %v19
    %v108 = vpop.permute.xlu0 %107
    %110 = vset.pattern.permute.xlu0 1
    %111 = vperm.xlu0 %110, %v20
    %v112 = vpop.permute.xlu0 %111
    %114 = vset.pattern.permute.xlu0 1
    %115 = vperm.xlu0 %114, %v21
    %v116 = vpop.permute.xlu0 %115
    %118 = vset.pattern.permute.xlu0 1
    %119 = vperm.xlu0 %118, %v22
    %v120 = vpop.permute.xlu0 %119
    %v122 = vlaneseq
    %v123 = vshrl.u32 %v122, 7
    %v124 = vsub.s32 1, %v123
    %v125 = vrot.slane %v35, %v124
    %v126 = vmul.f32 %v92, %v125
    %v127 = vmul.f32 %v96, %v125
    %v128 = vmul.f32 %v100, %v125
    %v129 = vmul.f32 %v104, %v125
    %v130 = vmul.f32 %v108, %v125
    %v131 = vmul.f32 %v112, %v125
    %v132 = vmul.f32 %v116, %v125
    %v133 = vmul.f32 %v120, %v125
    %134 = vset.pattern.permute.xlu0 2
    %135 = vperm.xlu0 %134, %v15
    %v136 = vpop.permute.xlu0 %135
    %138 = vset.pattern.permute.xlu0 2
    %139 = vperm.xlu0 %138, %v16
    %v140 = vpop.permute.xlu0 %139
    %142 = vset.pattern.permute.xlu0 2
    %143 = vperm.xlu0 %142, %v17
    %v144 = vpop.permute.xlu0 %143
    %146 = vset.pattern.permute.xlu0 2
    %147 = vperm.xlu0 %146, %v18
    %v148 = vpop.permute.xlu0 %147
    %150 = vset.pattern.permute.xlu0 2
    %151 = vperm.xlu0 %150, %v19
    %v152 = vpop.permute.xlu0 %151
    %154 = vset.pattern.permute.xlu0 2
    %155 = vperm.xlu0 %154, %v20
    %v156 = vpop.permute.xlu0 %155
    %158 = vset.pattern.permute.xlu0 2
    %159 = vperm.xlu0 %158, %v21
    %v160 = vpop.permute.xlu0 %159
    %162 = vset.pattern.permute.xlu0 2
    %163 = vperm.xlu0 %162, %v22
    %v164 = vpop.permute.xlu0 %163
    %v166 = vlaneseq
    %v167 = vshrl.u32 %v166, 7
    %v168 = vsub.s32 2, %v167
    %v169 = vrot.slane %v35, %v168
    %v170 = vmul.f32 %v136, %v169
    %v171 = vmul.f32 %v140, %v169
    %v172 = vmul.f32 %v144, %v169
    %v173 = vmul.f32 %v148, %v169
    %v174 = vmul.f32 %v152, %v169
    %v175 = vmul.f32 %v156, %v169
    %v176 = vmul.f32 %v160, %v169
    %v177 = vmul.f32 %v164, %v169
    %178 = vset.pattern.permute.xlu0 3
    %179 = vperm.xlu0 %178, %v15
    %v180 = vpop.permute.xlu0 %179
    %182 = vset.pattern.permute.xlu0 3
    %183 = vperm.xlu0 %182, %v16
    %v184 = vpop.permute.xlu0 %183
    %186 = vset.pattern.permute.xlu0 3
    %187 = vperm.xlu0 %186, %v17
    %v188 = vpop.permute.xlu0 %187
    %190 = vset.pattern.permute.xlu0 3
    %191 = vperm.xlu0 %190, %v18
    %v192 = vpop.permute.xlu0 %191
    %194 = vset.pattern.permute.xlu0 3
    %195 = vperm.xlu0 %194, %v19
    %v196 = vpop.permute.xlu0 %195
    %198 = vset.pattern.permute.xlu0 3
    %199 = vperm.xlu0 %198, %v20
    %v200 = vpop.permute.xlu0 %199
    %202 = vset.pattern.permute.xlu0 3
    %203 = vperm.xlu0 %202, %v21
    %v204 = vpop.permute.xlu0 %203
    %206 = vset.pattern.permute.xlu0 3
    %207 = vperm.xlu0 %206, %v22
    %v208 = vpop.permute.xlu0 %207
    %v210 = vlaneseq
    %v211 = vshrl.u32 %v210, 7
    %v212 = vsub.s32 3, %v211
    %v213 = vrot.slane %v35, %v212
    %v214 = vmul.f32 %v180, %v213
    %v215 = vmul.f32 %v184, %v213
    %v216 = vmul.f32 %v188, %v213
    %v217 = vmul.f32 %v192, %v213
    %v218 = vmul.f32 %v196, %v213
    %v219 = vmul.f32 %v200, %v213
    %v220 = vmul.f32 %v204, %v213
    %v221 = vmul.f32 %v208, %v213
    %v222 = vadd.f32 %v82, %v126
    %v223 = vadd.f32 %v83, %v127
    %v224 = vadd.f32 %v84, %v128
    %v225 = vadd.f32 %v85, %v129
    %v226 = vadd.f32 %v86, %v130
    %v227 = vadd.f32 %v87, %v131
    %v228 = vadd.f32 %v88, %v132
    %v229 = vadd.f32 %v89, %v133
    %v230 = vadd.f32 %v170, %v214
    %v231 = vadd.f32 %v171, %v215
    %v232 = vadd.f32 %v172, %v216
    %v233 = vadd.f32 %v173, %v217
    %v234 = vadd.f32 %v174, %v218
    %v235 = vadd.f32 %v175, %v219
    %v236 = vadd.f32 %v176, %v220
    %v237 = vadd.f32 %v177, %v221
    %v238 = vadd.f32 %v222, %v230
    %v239 = vadd.f32 %v223, %v231
    %v240 = vadd.f32 %v224, %v232
    %v241 = vadd.f32 %v225, %v233
    %v242 = vadd.f32 %v226, %v234
    %v243 = vadd.f32 %v227, %v235
    %v244 = vadd.f32 %v228, %v236
    %v245 = vadd.f32 %v229, %v237
    %246 = vadd.xlane.f32.xlu0 %v238
    %v247 = vpop.xlane.xlu0 %246
    %248 = vadd.xlane.f32.xlu0 %v239
    %v249 = vpop.xlane.xlu0 %248
    %250 = vadd.xlane.f32.xlu0 %v240
    %v251 = vpop.xlane.xlu0 %250
    %252 = vadd.xlane.f32.xlu0 %v241
    %v253 = vpop.xlane.xlu0 %252
    %254 = vadd.xlane.f32.xlu0 %v242
    %v255 = vpop.xlane.xlu0 %254
    %256 = vadd.xlane.f32.xlu0 %v243
    %v257 = vpop.xlane.xlu0 %256
    %258 = vadd.xlane.f32.xlu0 %v244
    %v259 = vpop.xlane.xlu0 %258
    %260 = vadd.xlane.f32.xlu0 %v245
    %v261 = vpop.xlane.xlu0 %260
    %v262 = vmul.f32 %v247, 0.0078125
    %v263 = vmul.f32 %v249, 0.0078125
    %v264 = vmul.f32 %v251, 0.0078125
    %v265 = vmul.f32 %v253, 0.0078125
    %v266 = vmul.f32 %v255, 0.0078125
    %v267 = vmul.f32 %v257, 0.0078125
    %v268 = vmul.f32 %v259, 0.0078125
    %v269 = vmul.f32 %v261, 0.0078125
    %v270 = vmul.f32 %v238, %v238
    %v271 = vmul.f32 %v239, %v239
    %v272 = vmul.f32 %v240, %v240
    %v273 = vmul.f32 %v241, %v241
    %v274 = vmul.f32 %v242, %v242
    %v275 = vmul.f32 %v243, %v243
    %v276 = vmul.f32 %v244, %v244
    %v277 = vmul.f32 %v245, %v245
    %278 = vadd.xlane.f32.xlu0 %v270
    %v279 = vpop.xlane.xlu0 %278
    %280 = vadd.xlane.f32.xlu0 %v271
    %v281 = vpop.xlane.xlu0 %280
    %282 = vadd.xlane.f32.xlu0 %v272
    %v283 = vpop.xlane.xlu0 %282
    %284 = vadd.xlane.f32.xlu0 %v273
    %v285 = vpop.xlane.xlu0 %284
    %286 = vadd.xlane.f32.xlu0 %v274
    %v287 = vpop.xlane.xlu0 %286
    %288 = vadd.xlane.f32.xlu0 %v275
    %v289 = vpop.xlane.xlu0 %288
    %290 = vadd.xlane.f32.xlu0 %v276
    %v291 = vpop.xlane.xlu0 %290
    %292 = vadd.xlane.f32.xlu0 %v277
    %v293 = vpop.xlane.xlu0 %292
    %v294 = vmul.f32 %v279, 0.0078125
    %v295 = vmul.f32 %v281, 0.0078125
    %v296 = vmul.f32 %v283, 0.0078125
    %v297 = vmul.f32 %v285, 0.0078125
    %v298 = vmul.f32 %v287, 0.0078125
    %v299 = vmul.f32 %v289, 0.0078125
    %v300 = vmul.f32 %v291, 0.0078125
    %v301 = vmul.f32 %v293, 0.0078125
    %v302 = vmul.f32 %v262, %v262
    %v303 = vmul.f32 %v263, %v263
    %v304 = vmul.f32 %v264, %v264
    %v305 = vmul.f32 %v265, %v265
    %v306 = vmul.f32 %v266, %v266
    %v307 = vmul.f32 %v267, %v267
    %v308 = vmul.f32 %v268, %v268
    %v309 = vmul.f32 %v269, %v269
    %v310 = vsub.f32 %v294, %v302
    %v311 = vsub.f32 %v295, %v303
    %v312 = vsub.f32 %v296, %v304
    %v313 = vsub.f32 %v297, %v305
    %v314 = vsub.f32 %v298, %v306
    %v315 = vsub.f32 %v299, %v307
    %v316 = vsub.f32 %v300, %v308
    %v317 = vsub.f32 %v301, %v309
    %v318 = vadd.f32 %v310, 0.001
    %v319 = vadd.f32 %v311, 0.001
    %v320 = vadd.f32 %v312, 0.001
    %v321 = vadd.f32 %v313, 0.001
    %v322 = vadd.f32 %v314, 0.001
    %v323 = vadd.f32 %v315, 0.001
    %v324 = vadd.f32 %v316, 0.001
    %v325 = vadd.f32 %v317, 0.001
    %v326 = vrsqrt.pop %v318
    %v327 = vrsqrt.pop %v319
    %v328 = vrsqrt.pop %v320
    %v329 = vrsqrt.pop %v321
    %v330 = vrsqrt.pop %v322
    %v331 = vrsqrt.pop %v323
    %v332 = vrsqrt.pop %v324
    %v333 = vrsqrt.pop %v325
    %v334 = vmul.f32 %v326, %v326
    %v335 = vmul.f32 %v327, %v327
    %v336 = vmul.f32 %v328, %v328
    %v337 = vmul.f32 %v329, %v329
    %v338 = vmul.f32 %v330, %v330
    %v339 = vmul.f32 %v331, %v331
    %v340 = vmul.f32 %v332, %v332
    %v341 = vmul.f32 %v333, %v333
    %v342 = vmul.f32 %v310, %v334
    %v343 = vmul.f32 %v311, %v335
    %v344 = vmul.f32 %v312, %v336
    %v345 = vmul.f32 %v313, %v337
    %v346 = vmul.f32 %v314, %v338
    %v347 = vmul.f32 %v315, %v339
    %v348 = vmul.f32 %v316, %v340
    %v349 = vmul.f32 %v317, %v341
    %v350 = vadd.f32 %v342, 0.0
    %v351 = vadd.f32 %v343, 0.0
    %v352 = vadd.f32 %v344, 0.0
    %v353 = vadd.f32 %v345, 0.0
    %v354 = vadd.f32 %v346, 0.0
    %v355 = vadd.f32 %v347, 0.0
    %v356 = vadd.f32 %v348, 0.0
    %v357 = vadd.f32 %v349, 0.0
    %v358 = vlaneseq
    %v359 = vshrl.u32 %v358, 7
    %v360 = vsub.s32 0, %v359
    %v361 = vrot.slane %v37, %v360
    %v362 = vmul.f32 %v41, %v361
    %v363 = vmul.f32 %v46, %v361
    %v364 = vmul.f32 %v51, %v361
    %v365 = vmul.f32 %v56, %v361
    %v366 = vmul.f32 %v61, %v361
    %v367 = vmul.f32 %v66, %v361
    %v368 = vmul.f32 %v71, %v361
    %v369 = vmul.f32 %v76, %v361
    %v370 = vlaneseq
    %v371 = vshrl.u32 %v370, 7
    %v372 = vsub.s32 1, %v371
    %v373 = vrot.slane %v37, %v372
    %v374 = vmul.f32 %v92, %v373
    %v375 = vmul.f32 %v96, %v373
    %v376 = vmul.f32 %v100, %v373
    %v377 = vmul.f32 %v104, %v373
    %v378 = vmul.f32 %v108, %v373
    %v379 = vmul.f32 %v112, %v373
    %v380 = vmul.f32 %v116, %v373
    %v381 = vmul.f32 %v120, %v373
    %v382 = vlaneseq
    %v383 = vshrl.u32 %v382, 7
    %v384 = vsub.s32 2, %v383
    %v385 = vrot.slane %v37, %v384
    %v386 = vmul.f32 %v136, %v385
    %v387 = vmul.f32 %v140, %v385
    %v388 = vmul.f32 %v144, %v385
    %v389 = vmul.f32 %v148, %v385
    %v390 = vmul.f32 %v152, %v385
    %v391 = vmul.f32 %v156, %v385
    %v392 = vmul.f32 %v160, %v385
    %v393 = vmul.f32 %v164, %v385
    %v394 = vlaneseq
    %v395 = vshrl.u32 %v394, 7
    %v396 = vsub.s32 3, %v395
    %v397 = vrot.slane %v37, %v396
    %v398 = vmul.f32 %v180, %v397
    %v399 = vmul.f32 %v184, %v397
    %v400 = vmul.f32 %v188, %v397
    %v401 = vmul.f32 %v192, %v397
    %v402 = vmul.f32 %v196, %v397
    %v403 = vmul.f32 %v200, %v397
    %v404 = vmul.f32 %v204, %v397
    %v405 = vmul.f32 %v208, %v397
    %v406 = vadd.f32 %v362, %v374
    %v407 = vadd.f32 %v363, %v375
    %v408 = vadd.f32 %v364, %v376
    %v409 = vadd.f32 %v365, %v377
    %v410 = vadd.f32 %v366, %v378
    %v411 = vadd.f32 %v367, %v379
    %v412 = vadd.f32 %v368, %v380
    %v413 = vadd.f32 %v369, %v381
    %v414 = vadd.f32 %v386, %v398
    %v415 = vadd.f32 %v387, %v399
    %v416 = vadd.f32 %v388, %v400
    %v417 = vadd.f32 %v389, %v401
    %v418 = vadd.f32 %v390, %v402
    %v419 = vadd.f32 %v391, %v403
    %v420 = vadd.f32 %v392, %v404
    %v421 = vadd.f32 %v393, %v405
    %v422 = vadd.f32 %v406, %v414
    %v423 = vadd.f32 %v407, %v415
    %v424 = vadd.f32 %v408, %v416
    %v425 = vadd.f32 %v409, %v417
    %v426 = vadd.f32 %v410, %v418
    %v427 = vadd.f32 %v411, %v419
    %v428 = vadd.f32 %v412, %v420
    %v429 = vadd.f32 %v413, %v421
    %430 = vadd.xlane.f32.xlu0 %v422
    %v431 = vpop.xlane.xlu0 %430
    %432 = vadd.xlane.f32.xlu0 %v423
    %v433 = vpop.xlane.xlu0 %432
    %434 = vadd.xlane.f32.xlu0 %v424
    %v435 = vpop.xlane.xlu0 %434
    %436 = vadd.xlane.f32.xlu0 %v425
    %v437 = vpop.xlane.xlu0 %436
    %438 = vadd.xlane.f32.xlu0 %v426
    %v439 = vpop.xlane.xlu0 %438
    %440 = vadd.xlane.f32.xlu0 %v427
    %v441 = vpop.xlane.xlu0 %440
    %442 = vadd.xlane.f32.xlu0 %v428
    %v443 = vpop.xlane.xlu0 %442
    %444 = vadd.xlane.f32.xlu0 %v429
    %v445 = vpop.xlane.xlu0 %444
    %v446 = vmul.f32 %v431, 0.0078125
    %v447 = vmul.f32 %v433, 0.0078125
    %v448 = vmul.f32 %v435, 0.0078125
    %v449 = vmul.f32 %v437, 0.0078125
    %v450 = vmul.f32 %v439, 0.0078125
    %v451 = vmul.f32 %v441, 0.0078125
    %v452 = vmul.f32 %v443, 0.0078125
    %v453 = vmul.f32 %v445, 0.0078125
    %v454 = vmul.f32 %v422, %v422
    %v455 = vmul.f32 %v423, %v423
    %v456 = vmul.f32 %v424, %v424
    %v457 = vmul.f32 %v425, %v425
    %v458 = vmul.f32 %v426, %v426
    %v459 = vmul.f32 %v427, %v427
    %v460 = vmul.f32 %v428, %v428
    %v461 = vmul.f32 %v429, %v429
    %462 = vadd.xlane.f32.xlu0 %v454
    %v463 = vpop.xlane.xlu0 %462
    %464 = vadd.xlane.f32.xlu0 %v455
    %v465 = vpop.xlane.xlu0 %464
    %466 = vadd.xlane.f32.xlu0 %v456
    %v467 = vpop.xlane.xlu0 %466
    %468 = vadd.xlane.f32.xlu0 %v457
    %v469 = vpop.xlane.xlu0 %468
    %470 = vadd.xlane.f32.xlu0 %v458
    %v471 = vpop.xlane.xlu0 %470
    %472 = vadd.xlane.f32.xlu0 %v459
    %v473 = vpop.xlane.xlu0 %472
    %474 = vadd.xlane.f32.xlu0 %v460
    %v475 = vpop.xlane.xlu0 %474
    %476 = vadd.xlane.f32.xlu0 %v461
    %v477 = vpop.xlane.xlu0 %476
    %v478 = vmul.f32 %v463, 0.0078125
    %v479 = vmul.f32 %v465, 0.0078125
    %v480 = vmul.f32 %v467, 0.0078125
    %v481 = vmul.f32 %v469, 0.0078125
    %v482 = vmul.f32 %v471, 0.0078125
    %v483 = vmul.f32 %v473, 0.0078125
    %v484 = vmul.f32 %v475, 0.0078125
    %v485 = vmul.f32 %v477, 0.0078125
    %v486 = vmul.f32 %v446, %v446
    %v487 = vmul.f32 %v447, %v447
    %v488 = vmul.f32 %v448, %v448
    %v489 = vmul.f32 %v449, %v449
    %v490 = vmul.f32 %v450, %v450
    %v491 = vmul.f32 %v451, %v451
    %v492 = vmul.f32 %v452, %v452
    %v493 = vmul.f32 %v453, %v453
    %v494 = vsub.f32 %v478, %v486
    %v495 = vsub.f32 %v479, %v487
    %v496 = vsub.f32 %v480, %v488
    %v497 = vsub.f32 %v481, %v489
    %v498 = vsub.f32 %v482, %v490
    %v499 = vsub.f32 %v483, %v491
    %v500 = vsub.f32 %v484, %v492
    %v501 = vsub.f32 %v485, %v493
    %v502 = vadd.f32 %v494, 0.001
    %v503 = vadd.f32 %v495, 0.001
    %v504 = vadd.f32 %v496, 0.001
    %v505 = vadd.f32 %v497, 0.001
    %v506 = vadd.f32 %v498, 0.001
    %v507 = vadd.f32 %v499, 0.001
    %v508 = vadd.f32 %v500, 0.001
    %v509 = vadd.f32 %v501, 0.001
    %v510 = vrsqrt.pop %v502
    %v511 = vrsqrt.pop %v503
    %v512 = vrsqrt.pop %v504
    %v513 = vrsqrt.pop %v505
    %v514 = vrsqrt.pop %v506
    %v515 = vrsqrt.pop %v507
    %v516 = vrsqrt.pop %v508
    %v517 = vrsqrt.pop %v509
    %v518 = vmul.f32 %v510, %v510
    %v519 = vmul.f32 %v511, %v511
    %v520 = vmul.f32 %v512, %v512
    %v521 = vmul.f32 %v513, %v513
    %v522 = vmul.f32 %v514, %v514
    %v523 = vmul.f32 %v515, %v515
    %v524 = vmul.f32 %v516, %v516
    %v525 = vmul.f32 %v517, %v517
    %v526 = vmul.f32 %v494, %v518
    %v527 = vmul.f32 %v495, %v519
    %v528 = vmul.f32 %v496, %v520
    %v529 = vmul.f32 %v497, %v521
    %v530 = vmul.f32 %v498, %v522
    %v531 = vmul.f32 %v499, %v523
    %v532 = vmul.f32 %v500, %v524
    %v533 = vmul.f32 %v501, %v525
    %v534 = vadd.f32 %v350, %v526
    %v535 = vadd.f32 %v351, %v527
    %v536 = vadd.f32 %v352, %v528
    %v537 = vadd.f32 %v353, %v529
    %v538 = vadd.f32 %v354, %v530
    %v539 = vadd.f32 %v355, %v531
    %v540 = vadd.f32 %v356, %v532
    %v541 = vadd.f32 %v357, %v533
    %v542 = vmul.f32 %v534, 0.5
    %v543 = vmul.f32 %v535, 0.5
    %v544 = vmul.f32 %v536, 0.5
    %v545 = vmul.f32 %v537, 0.5
    %v546 = vmul.f32 %v538, 0.5
    %v547 = vmul.f32 %v539, 0.5
    %v548 = vmul.f32 %v540, 0.5
    %v549 = vmul.f32 %v541, 0.5
    %v550 = vadd.f32 %v542, 1e-05
    %v551 = vadd.f32 %v543, 1e-05
    %v552 = vadd.f32 %v544, 1e-05
    %v553 = vadd.f32 %v545, 1e-05
    %v554 = vadd.f32 %v546, 1e-05
    %v555 = vadd.f32 %v547, 1e-05
    %v556 = vadd.f32 %v548, 1e-05
    %v557 = vadd.f32 %v549, 1e-05
    %v558 = vrsqrt.pop %v550
    %v559 = vrsqrt.pop %v551
    %v560 = vrsqrt.pop %v552
    %v561 = vrsqrt.pop %v553
    %v562 = vrsqrt.pop %v554
    %v563 = vrsqrt.pop %v555
    %v564 = vrsqrt.pop %v556
    %v565 = vrsqrt.pop %v557
    %v566 = vmul.f32 %v27, %v558
    %v567 = vmul.f32 %v28, %v559
    %v568 = vmul.f32 %v29, %v560
    %v569 = vmul.f32 %v30, %v561
    %v570 = vmul.f32 %v31, %v562
    %v571 = vmul.f32 %v32, %v563
    %v572 = vmul.f32 %v33, %v564
    %v573 = vmul.f32 %v34, %v565
    %v574 = vmul.f32 %v326, %v566
    %v575 = vmul.f32 %v327, %v567
    %v576 = vmul.f32 %v328, %v568
    %v577 = vmul.f32 %v329, %v569
    %v578 = vmul.f32 %v330, %v570
    %v579 = vmul.f32 %v331, %v571
    %v580 = vmul.f32 %v332, %v572
    %v581 = vmul.f32 %v333, %v573
    %v582 = vmul.f32 %v262, %v574
    %v583 = vmul.f32 %v263, %v575
    %v584 = vmul.f32 %v264, %v576
    %v585 = vmul.f32 %v265, %v577
    %v586 = vmul.f32 %v266, %v578
    %v587 = vmul.f32 %v267, %v579
    %v588 = vmul.f32 %v268, %v580
    %v589 = vmul.f32 %v269, %v581
    %598 = vrot.lane.b32.xlu0 %v582, 1
    %v599 = vpop.permute.xlu0 %598
    %600 = vrot.lane.b32.xlu0 %v583, 1
    %v601 = vpop.permute.xlu0 %600
    %602 = vrot.lane.b32.xlu0 %v584, 1
    %v603 = vpop.permute.xlu0 %602
    %604 = vrot.lane.b32.xlu0 %v585, 1
    %v605 = vpop.permute.xlu0 %604
    %606 = vrot.lane.b32.xlu0 %v586, 1
    %v607 = vpop.permute.xlu0 %606
    %608 = vrot.lane.b32.xlu0 %v587, 1
    %v609 = vpop.permute.xlu0 %608
    %610 = vrot.lane.b32.xlu0 %v588, 1
    %v611 = vpop.permute.xlu0 %610
    %612 = vrot.lane.b32.xlu0 %v589, 1
    %v613 = vpop.permute.xlu0 %612
    %v622 = vsub.f32 %v27, %v599
    %v623 = vsub.f32 %v28, %v601
    %v624 = vsub.f32 %v29, %v603
    %v625 = vsub.f32 %v30, %v605
    %v626 = vsub.f32 %v31, %v607
    %v627 = vsub.f32 %v32, %v609
    %v628 = vsub.f32 %v33, %v611
    %v629 = vsub.f32 %v34, %v613
    %631 = vset.pattern.permute.xlu0 0
    %632 = vperm.xlu0 %631, %v574
    %v633 = vpop.permute.xlu0 %632
    %636 = vset.pattern.permute.xlu0 0
    %637 = vperm.xlu0 %636, %v575
    %v638 = vpop.permute.xlu0 %637
    %641 = vset.pattern.permute.xlu0 0
    %642 = vperm.xlu0 %641, %v576
    %v643 = vpop.permute.xlu0 %642
    %646 = vset.pattern.permute.xlu0 0
    %647 = vperm.xlu0 %646, %v577
    %v648 = vpop.permute.xlu0 %647
    %651 = vset.pattern.permute.xlu0 0
    %652 = vperm.xlu0 %651, %v578
    %v653 = vpop.permute.xlu0 %652
    %656 = vset.pattern.permute.xlu0 0
    %657 = vperm.xlu0 %656, %v579
    %v658 = vpop.permute.xlu0 %657
    %661 = vset.pattern.permute.xlu0 0
    %662 = vperm.xlu0 %661, %v580
    %v663 = vpop.permute.xlu0 %662
    %666 = vset.pattern.permute.xlu0 0
    %667 = vperm.xlu0 %666, %v581
    %v668 = vpop.permute.xlu0 %667
    %v670 = vmul.f32 %v238, %v633
    %v671 = vmul.f32 %v239, %v638
    %v672 = vmul.f32 %v240, %v643
    %v673 = vmul.f32 %v241, %v648
    %v674 = vmul.f32 %v242, %v653
    %v675 = vmul.f32 %v243, %v658
    %v676 = vmul.f32 %v244, %v663
    %v677 = vmul.f32 %v245, %v668
    %679 = vset.pattern.permute.xlu0 1
    %680 = vperm.xlu0 %679, %v622
    %v681 = vpop.permute.xlu0 %680
    %684 = vset.pattern.permute.xlu0 1
    %685 = vperm.xlu0 %684, %v623
    %v686 = vpop.permute.xlu0 %685
    %689 = vset.pattern.permute.xlu0 1
    %690 = vperm.xlu0 %689, %v624
    %v691 = vpop.permute.xlu0 %690
    %694 = vset.pattern.permute.xlu0 1
    %695 = vperm.xlu0 %694, %v625
    %v696 = vpop.permute.xlu0 %695
    %699 = vset.pattern.permute.xlu0 1
    %700 = vperm.xlu0 %699, %v626
    %v701 = vpop.permute.xlu0 %700
    %704 = vset.pattern.permute.xlu0 1
    %705 = vperm.xlu0 %704, %v627
    %v706 = vpop.permute.xlu0 %705
    %709 = vset.pattern.permute.xlu0 1
    %710 = vperm.xlu0 %709, %v628
    %v711 = vpop.permute.xlu0 %710
    %714 = vset.pattern.permute.xlu0 1
    %715 = vperm.xlu0 %714, %v629
    %v716 = vpop.permute.xlu0 %715
    %v718 = vadd.f32 %v670, %v681
    %v719 = vadd.f32 %v671, %v686
    %v720 = vadd.f32 %v672, %v691
    %v721 = vadd.f32 %v673, %v696
    %v722 = vadd.f32 %v674, %v701
    %v723 = vadd.f32 %v675, %v706
    %v724 = vadd.f32 %v676, %v711
    %v725 = vadd.f32 %v677, %v716
    %v726 = vmax.f32 %v718, 0.0
    %v727 = vmax.f32 %v719, 0.0
    %v728 = vmax.f32 %v720, 0.0
    %v729 = vmax.f32 %v721, 0.0
    %v730 = vmax.f32 %v722, 0.0
    %v731 = vmax.f32 %v723, 0.0
    %v732 = vmax.f32 %v724, 0.0
    %v733 = vmax.f32 %v725, 0.0
    %v734 = vmul.f32 %v510, %v566
    %v735 = vmul.f32 %v511, %v567
    %v736 = vmul.f32 %v512, %v568
    %v737 = vmul.f32 %v513, %v569
    %v738 = vmul.f32 %v514, %v570
    %v739 = vmul.f32 %v515, %v571
    %v740 = vmul.f32 %v516, %v572
    %v741 = vmul.f32 %v517, %v573
    %v742 = vmul.f32 %v446, %v734
    %v743 = vmul.f32 %v447, %v735
    %v744 = vmul.f32 %v448, %v736
    %v745 = vmul.f32 %v449, %v737
    %v746 = vmul.f32 %v450, %v738
    %v747 = vmul.f32 %v451, %v739
    %v748 = vmul.f32 %v452, %v740
    %v749 = vmul.f32 %v453, %v741
    %758 = vrot.lane.b32.xlu0 %v742, 1
    %v759 = vpop.permute.xlu0 %758
    %760 = vrot.lane.b32.xlu0 %v743, 1
    %v761 = vpop.permute.xlu0 %760
    %762 = vrot.lane.b32.xlu0 %v744, 1
    %v763 = vpop.permute.xlu0 %762
    %764 = vrot.lane.b32.xlu0 %v745, 1
    %v765 = vpop.permute.xlu0 %764
    %766 = vrot.lane.b32.xlu0 %v746, 1
    %v767 = vpop.permute.xlu0 %766
    %768 = vrot.lane.b32.xlu0 %v747, 1
    %v769 = vpop.permute.xlu0 %768
    %770 = vrot.lane.b32.xlu0 %v748, 1
    %v771 = vpop.permute.xlu0 %770
    %772 = vrot.lane.b32.xlu0 %v749, 1
    %v773 = vpop.permute.xlu0 %772
    %v782 = vsub.f32 %v27, %v759
    %v783 = vsub.f32 %v28, %v761
    %v784 = vsub.f32 %v29, %v763
    %v785 = vsub.f32 %v30, %v765
    %v786 = vsub.f32 %v31, %v767
    %v787 = vsub.f32 %v32, %v769
    %v788 = vsub.f32 %v33, %v771
    %v789 = vsub.f32 %v34, %v773
    %791 = vset.pattern.permute.xlu0 0
    %792 = vperm.xlu0 %791, %v734
    %v793 = vpop.permute.xlu0 %792
    %796 = vset.pattern.permute.xlu0 0
    %797 = vperm.xlu0 %796, %v735
    %v798 = vpop.permute.xlu0 %797
    %801 = vset.pattern.permute.xlu0 0
    %802 = vperm.xlu0 %801, %v736
    %v803 = vpop.permute.xlu0 %802
    %806 = vset.pattern.permute.xlu0 0
    %807 = vperm.xlu0 %806, %v737
    %v808 = vpop.permute.xlu0 %807
    %811 = vset.pattern.permute.xlu0 0
    %812 = vperm.xlu0 %811, %v738
    %v813 = vpop.permute.xlu0 %812
    %816 = vset.pattern.permute.xlu0 0
    %817 = vperm.xlu0 %816, %v739
    %v818 = vpop.permute.xlu0 %817
    %821 = vset.pattern.permute.xlu0 0
    %822 = vperm.xlu0 %821, %v740
    %v823 = vpop.permute.xlu0 %822
    %826 = vset.pattern.permute.xlu0 0
    %827 = vperm.xlu0 %826, %v741
    %v828 = vpop.permute.xlu0 %827
    %v830 = vmul.f32 %v422, %v793
    %v831 = vmul.f32 %v423, %v798
    %v832 = vmul.f32 %v424, %v803
    %v833 = vmul.f32 %v425, %v808
    %v834 = vmul.f32 %v426, %v813
    %v835 = vmul.f32 %v427, %v818
    %v836 = vmul.f32 %v428, %v823
    %v837 = vmul.f32 %v429, %v828
    %839 = vset.pattern.permute.xlu0 1
    %840 = vperm.xlu0 %839, %v782
    %v841 = vpop.permute.xlu0 %840
    %844 = vset.pattern.permute.xlu0 1
    %845 = vperm.xlu0 %844, %v783
    %v846 = vpop.permute.xlu0 %845
    %849 = vset.pattern.permute.xlu0 1
    %850 = vperm.xlu0 %849, %v784
    %v851 = vpop.permute.xlu0 %850
    %854 = vset.pattern.permute.xlu0 1
    %855 = vperm.xlu0 %854, %v785
    %v856 = vpop.permute.xlu0 %855
    %859 = vset.pattern.permute.xlu0 1
    %860 = vperm.xlu0 %859, %v786
    %v861 = vpop.permute.xlu0 %860
    %864 = vset.pattern.permute.xlu0 1
    %865 = vperm.xlu0 %864, %v787
    %v866 = vpop.permute.xlu0 %865
    %869 = vset.pattern.permute.xlu0 1
    %870 = vperm.xlu0 %869, %v788
    %v871 = vpop.permute.xlu0 %870
    %874 = vset.pattern.permute.xlu0 1
    %875 = vperm.xlu0 %874, %v789
    %v876 = vpop.permute.xlu0 %875
    %v878 = vadd.f32 %v830, %v841
    %v879 = vadd.f32 %v831, %v846
    %v880 = vadd.f32 %v832, %v851
    %v881 = vadd.f32 %v833, %v856
    %v882 = vadd.f32 %v834, %v861
    %v883 = vadd.f32 %v835, %v866
    %v884 = vadd.f32 %v836, %v871
    %v885 = vadd.f32 %v837, %v876
    %v886 = vmax.f32 %v878, 0.0
    %v887 = vmax.f32 %v879, 0.0
    %v888 = vmax.f32 %v880, 0.0
    %v889 = vmax.f32 %v881, 0.0
    %v890 = vmax.f32 %v882, 0.0
    %v891 = vmax.f32 %v883, 0.0
    %v892 = vmax.f32 %v884, 0.0
    %v893 = vmax.f32 %v885, 0.0
    %vm894 = vcmask 523264
    %v896 = vsel %vm894, %v23, 0
    %v899 = vsel %vm894, %v24, 0
    %901 = vmatprep.subr.mxu0 0.0
    %902 = vmatpush1.msra.mxu0 %v726
    %903 = vmatprep.subr.mxu0 0.0
    %904 = vmatpush1.msra.mxu0 %v727
    %905 = vmatprep.subr.mxu0 0.0
    %906 = vmatpush1.msra.mxu0 %v728
    %907 = vmatprep.subr.mxu0 0.0
    %908 = vmatpush1.msra.mxu0 %v729
    %909 = vmatprep.subr.mxu0 0.0
    %910 = vmatpush1.msra.mxu0 %v730
    %911 = vmatprep.subr.mxu0 0.0
    %912 = vmatpush1.msra.mxu0 %v731
    %913 = vmatprep.subr.mxu0 0.0
    %914 = vmatpush1.msra.mxu0 %v732
    %915 = vmatprep.subr.mxu0 0.0
    %916 = vmatpush1.msra.mxu0 %v733
    %917 = vmatprep.subr.mxu0 0.0
    %918 = vmatpush1.msra.mxu0 0.0
    %919 = vmatprep.subr.mxu0 0.0
    %920 = vmatpush1.msra.mxu0 0.0
    %921 = vmatprep.subr.mxu0 0.0
    %922 = vmatpush1.msra.mxu0 0.0
    %923 = vmatprep.subr.mxu0 0.0
    %924 = vmatpush1.msra.mxu0 0.0
    %925 = vmatprep.subr.mxu0 0.0
    %926 = vmatpush1.msra.mxu0 0.0
    %927 = vmatprep.subr.mxu0 0.0
    %928 = vmatpush1.msra.mxu0 0.0
    %929 = vmatprep.subr.mxu0 0.0
    %930 = vmatpush1.msra.mxu0 0.0
    %931 = vmatprep.subr.mxu0 0.0
    %932 = vmatpush1.msra.mxu0 0.0
    %933 = vmatprep.subr.mxu0 0.0
    %934 = vmatpush1.msra.mxu0 0.0
    %935 = vmatprep.subr.mxu0 0.0
    %936 = vmatpush1.msra.mxu0 0.0
    %937 = vmatprep.subr.mxu0 0.0
    %938 = vmatpush1.msra.mxu0 0.0
    %939 = vmatprep.subr.mxu0 0.0
    %940 = vmatpush1.msra.mxu0 0.0
    %941 = vmatprep.subr.mxu0 0.0
    %942 = vmatpush1.msra.mxu0 0.0
    %943 = vmatprep.subr.mxu0 0.0
    %944 = vmatpush1.msra.mxu0 0.0
    %945 = vmatprep.subr.mxu0 0.0
    %946 = vmatpush1.msra.mxu0 0.0
    %947 = vmatprep.subr.mxu0 0.0
    %948 = vmatpush1.msra.mxu0 0.0
    %949 = vmatprep.subr.mxu0 0.0
    %950 = vmatpush1.msra.mxu0 0.0
    %951 = vmatprep.subr.mxu0 0.0
    %952 = vmatpush1.msra.mxu0 0.0
    %953 = vmatprep.subr.mxu0 0.0
    %954 = vmatpush1.msra.mxu0 0.0
    %955 = vmatprep.subr.mxu0 0.0
    %956 = vmatpush1.msra.mxu0 0.0
    %957 = vmatprep.subr.mxu0 0.0
    %958 = vmatpush1.msra.mxu0 0.0
    %959 = vmatprep.subr.mxu0 0.0
    %960 = vmatpush1.msra.mxu0 0.0
    %961 = vmatprep.subr.mxu0 0.0
    %962 = vmatpush1.msra.mxu0 0.0
    %963 = vmatprep.subr.mxu0 0.0
    %964 = vmatpush1.msra.mxu0 0.0
    %965 = vmatprep.mubr.f32.mxu0 0.0
    %966 = vmatmul.mubr.f32.gmra.mrb[0].mxu0 %v896
    %v967 = vpop.f32.mrb[0].mxu0
    %v968 = vadd.f32 0.0, %v967
    %v969 = vpop.f32.mrb[0].mxu0
    %970 = vmatprep.mubr.f32.mxu0 0.0
    %971 = vmatmul.mubr.f32.gmra.mrb[0].mxu0 %v899
    %v972 = vpop.f32.mrb[0].mxu0
    %v973 = vadd.f32 0.0, %v972
    %v974 = vpop.f32.mrb[0].mxu0
    %975 = vdwg.mxu0
    %976 = vadd.xlane.f32.xlu0 %v968
    %v977 = vpop.xlane.xlu0 %976
    %978 = vadd.xlane.f32.xlu0 %v973
    %v979 = vpop.xlane.xlu0 %978
    %v980 = vmul.f32 %v977, 0.0078125
    %v981 = vmul.f32 %v979, 0.0078125
    %v982 = vmul.f32 %v968, %v968
    %v983 = vmul.f32 %v973, %v973
    %984 = vadd.xlane.f32.xlu0 %v982
    %v985 = vpop.xlane.xlu0 %984
    %986 = vadd.xlane.f32.xlu0 %v983
    %v987 = vpop.xlane.xlu0 %986
    %v988 = vmul.f32 %v985, 0.0078125
    %v989 = vmul.f32 %v987, 0.0078125
    %v990 = vmul.f32 %v980, %v980
    %v991 = vmul.f32 %v981, %v981
    %v992 = vsub.f32 %v988, %v990
    %v993 = vsub.f32 %v989, %v991
    %v994 = vadd.f32 %v992, 0.001
    %v995 = vadd.f32 %v993, 0.001
    %v996 = vrsqrt.pop %v994
    %v997 = vrsqrt.pop %v995
    %v998 = vmul.f32 %v996, %v996
    %v999 = vmul.f32 %v997, %v997
    %v1000 = vmul.f32 %v992, %v998
    %v1001 = vmul.f32 %v993, %v999
    %v1002 = vadd.f32 %v1000, 0.0
    %v1003 = vadd.f32 %v1001, 0.0
    %1004 = vmatprep.subr.mxu0 0.0
    %1005 = vmatpush1.msra.mxu0 %v886
    %1006 = vmatprep.subr.mxu0 0.0
    %1007 = vmatpush1.msra.mxu0 %v887
    %1008 = vmatprep.subr.mxu0 0.0
    %1009 = vmatpush1.msra.mxu0 %v888
    %1010 = vmatprep.subr.mxu0 0.0
    %1011 = vmatpush1.msra.mxu0 %v889
    %1012 = vmatprep.subr.mxu0 0.0
    %1013 = vmatpush1.msra.mxu0 %v890
    %1014 = vmatprep.subr.mxu0 0.0
    %1015 = vmatpush1.msra.mxu0 %v891
    %1016 = vmatprep.subr.mxu0 0.0
    %1017 = vmatpush1.msra.mxu0 %v892
    %1018 = vmatprep.subr.mxu0 0.0
    %1019 = vmatpush1.msra.mxu0 %v893
    %1020 = vmatprep.subr.mxu0 0.0
    %1021 = vmatpush1.msra.mxu0 0.0
    %1022 = vmatprep.subr.mxu0 0.0
    %1023 = vmatpush1.msra.mxu0 0.0
    %1024 = vmatprep.subr.mxu0 0.0
    %1025 = vmatpush1.msra.mxu0 0.0
    %1026 = vmatprep.subr.mxu0 0.0
    %1027 = vmatpush1.msra.mxu0 0.0
    %1028 = vmatprep.subr.mxu0 0.0
    %1029 = vmatpush1.msra.mxu0 0.0
    %1030 = vmatprep.subr.mxu0 0.0
    %1031 = vmatpush1.msra.mxu0 0.0
    %1032 = vmatprep.subr.mxu0 0.0
    %1033 = vmatpush1.msra.mxu0 0.0
    %1034 = vmatprep.subr.mxu0 0.0
    %1035 = vmatpush1.msra.mxu0 0.0
    %1036 = vmatprep.subr.mxu0 0.0
    %1037 = vmatpush1.msra.mxu0 0.0
    %1038 = vmatprep.subr.mxu0 0.0
    %1039 = vmatpush1.msra.mxu0 0.0
    %1040 = vmatprep.subr.mxu0 0.0
    %1041 = vmatpush1.msra.mxu0 0.0
    %1042 = vmatprep.subr.mxu0 0.0
    %1043 = vmatpush1.msra.mxu0 0.0
    %1044 = vmatprep.subr.mxu0 0.0
    %1045 = vmatpush1.msra.mxu0 0.0
    %1046 = vmatprep.subr.mxu0 0.0
    %1047 = vmatpush1.msra.mxu0 0.0
    %1048 = vmatprep.subr.mxu0 0.0
    %1049 = vmatpush1.msra.mxu0 0.0
    %1050 = vmatprep.subr.mxu0 0.0
    %1051 = vmatpush1.msra.mxu0 0.0
    %1052 = vmatprep.subr.mxu0 0.0
    %1053 = vmatpush1.msra.mxu0 0.0
    %1054 = vmatprep.subr.mxu0 0.0
    %1055 = vmatpush1.msra.mxu0 0.0
    %1056 = vmatprep.subr.mxu0 0.0
    %1057 = vmatpush1.msra.mxu0 0.0
    %1058 = vmatprep.subr.mxu0 0.0
    %1059 = vmatpush1.msra.mxu0 0.0
    %1060 = vmatprep.subr.mxu0 0.0
    %1061 = vmatpush1.msra.mxu0 0.0
    %1062 = vmatprep.subr.mxu0 0.0
    %1063 = vmatpush1.msra.mxu0 0.0
    %1064 = vmatprep.subr.mxu0 0.0
    %1065 = vmatpush1.msra.mxu0 0.0
    %1066 = vmatprep.subr.mxu0 0.0
    %1067 = vmatpush1.msra.mxu0 0.0
    %1068 = vmatprep.mubr.f32.mxu0 0.0
    %1069 = vmatmul.mubr.f32.gmra.mrb[0].mxu0 %v896
    %v1070 = vpop.f32.mrb[0].mxu0
    %v1071 = vadd.f32 0.0, %v1070
    %v1072 = vpop.f32.mrb[0].mxu0
    %1073 = vmatprep.mubr.f32.mxu0 0.0
    %1074 = vmatmul.mubr.f32.gmra.mrb[0].mxu0 %v899
    %v1075 = vpop.f32.mrb[0].mxu0
    %v1076 = vadd.f32 0.0, %v1075
    %v1077 = vpop.f32.mrb[0].mxu0
    %1078 = vdwg.mxu0
    %1079 = vadd.xlane.f32.xlu0 %v1071
    %v1080 = vpop.xlane.xlu0 %1079
    %1081 = vadd.xlane.f32.xlu0 %v1076
    %v1082 = vpop.xlane.xlu0 %1081
    %v1083 = vmul.f32 %v1080, 0.0078125
    %v1084 = vmul.f32 %v1082, 0.0078125
    %v1085 = vmul.f32 %v1071, %v1071
    %v1086 = vmul.f32 %v1076, %v1076
    %1087 = vadd.xlane.f32.xlu0 %v1085
    %v1088 = vpop.xlane.xlu0 %1087
    %1089 = vadd.xlane.f32.xlu0 %v1086
    %v1090 = vpop.xlane.xlu0 %1089
    %v1091 = vmul.f32 %v1088, 0.0078125
    %v1092 = vmul.f32 %v1090, 0.0078125
    %v1093 = vmul.f32 %v1083, %v1083
    %v1094 = vmul.f32 %v1084, %v1084
    %v1095 = vsub.f32 %v1091, %v1093
    %v1096 = vsub.f32 %v1092, %v1094
    %v1097 = vadd.f32 %v1095, 0.001
    %v1098 = vadd.f32 %v1096, 0.001
    %v1099 = vrsqrt.pop %v1097
    %v1100 = vrsqrt.pop %v1098
    %v1101 = vmul.f32 %v1099, %v1099
    %v1102 = vmul.f32 %v1100, %v1100
    %v1103 = vmul.f32 %v1095, %v1101
    %v1104 = vmul.f32 %v1096, %v1102
    %v1105 = vadd.f32 %v1002, %v1103
    %v1106 = vadd.f32 %v1003, %v1104
    %v1107 = vmul.f32 %v1105, 0.5
    %v1108 = vmul.f32 %v1106, 0.5
    %v1109 = vadd.f32 %v1107, 1e-05
    %v1110 = vadd.f32 %v1108, 1e-05
    %v1111 = vrsqrt.pop %v1109
    %v1112 = vrsqrt.pop %v1110
    %v1113 = vmul.f32 %v27, %v1111
    %v1114 = vmul.f32 %v28, %v1112
    %v1115 = vmul.f32 %v996, %v1113
    %v1116 = vmul.f32 %v997, %v1114
    %v1117 = vmul.f32 %v980, %v1115
    %v1118 = vmul.f32 %v981, %v1116
    %1121 = vrot.lane.b32.xlu0 %v1117, 1
    %v1122 = vpop.permute.xlu0 %1121
    %1123 = vrot.lane.b32.xlu0 %v1118, 1
    %v1124 = vpop.permute.xlu0 %1123
    %v1127 = vsub.f32 %v27, %v1122
    %v1128 = vsub.f32 %v28, %v1124
    %1130 = vset.pattern.permute.xlu0 2
    %1131 = vperm.xlu0 %1130, %v1115
    %v1132 = vpop.permute.xlu0 %1131
    %1135 = vset.pattern.permute.xlu0 2
    %1136 = vperm.xlu0 %1135, %v1116
    %v1137 = vpop.permute.xlu0 %1136
    %v1139 = vmul.f32 %v968, %v1132
    %v1140 = vmul.f32 %v973, %v1137
    %1142 = vset.pattern.permute.xlu0 3
    %1143 = vperm.xlu0 %1142, %v1127
    %v1144 = vpop.permute.xlu0 %1143
    %1147 = vset.pattern.permute.xlu0 3
    %1148 = vperm.xlu0 %1147, %v1128
    %v1149 = vpop.permute.xlu0 %1148
    %v1151 = vadd.f32 %v1139, %v1144
    %v1152 = vadd.f32 %v1140, %v1149
    %v1153 = vmax.f32 %v1151, 0.0
    %v1154 = vmax.f32 %v1152, 0.0
    %v1155 = vmul.f32 %v1099, %v1113
    %v1156 = vmul.f32 %v1100, %v1114
    %v1157 = vmul.f32 %v1083, %v1155
    %v1158 = vmul.f32 %v1084, %v1156
    %1161 = vrot.lane.b32.xlu0 %v1157, 1
    %v1162 = vpop.permute.xlu0 %1161
    %1163 = vrot.lane.b32.xlu0 %v1158, 1
    %v1164 = vpop.permute.xlu0 %1163
    %v1167 = vsub.f32 %v27, %v1162
    %v1168 = vsub.f32 %v28, %v1164
    %1170 = vset.pattern.permute.xlu0 2
    %1171 = vperm.xlu0 %1170, %v1155
    %v1172 = vpop.permute.xlu0 %1171
    %1175 = vset.pattern.permute.xlu0 2
    %1176 = vperm.xlu0 %1175, %v1156
    %v1177 = vpop.permute.xlu0 %1176
    %v1179 = vmul.f32 %v1071, %v1172
    %v1180 = vmul.f32 %v1076, %v1177
    %1182 = vset.pattern.permute.xlu0 3
    %1183 = vperm.xlu0 %1182, %v1167
    %v1184 = vpop.permute.xlu0 %1183
    %1187 = vset.pattern.permute.xlu0 3
    %1188 = vperm.xlu0 %1187, %v1168
    %v1189 = vpop.permute.xlu0 %1188
    %v1191 = vadd.f32 %v1179, %v1184
    %v1192 = vadd.f32 %v1180, %v1189
    %v1193 = vmax.f32 %v1191, 0.0
    %v1194 = vmax.f32 %v1192, 0.0
    %1196 = vset.pattern.permute.xlu0 0
    %1197 = vperm.xlu0 %1196, %v25
    %v1198 = vpop.permute.xlu0 %1197
    %v1200 = vlaneseq
    %v1201 = vshrl.u32 %v1200, 7
    %v1202 = vsub.s32 0, %v1201
    %v1203 = vrot.slane %v1153, %v1202
    %v1204 = vmul.f32 %v1198, %v1203
    %1205 = vset.pattern.permute.xlu0 1
    %1206 = vperm.xlu0 %1205, %v25
    %v1207 = vpop.permute.xlu0 %1206
    %v1209 = vlaneseq
    %v1210 = vshrl.u32 %v1209, 7
    %v1211 = vsub.s32 1, %v1210
    %v1212 = vrot.slane %v1153, %v1211
    %v1213 = vmul.f32 %v1207, %v1212
    %1214 = vset.pattern.permute.xlu0 2
    %1215 = vperm.xlu0 %1214, %v25
    %v1216 = vpop.permute.xlu0 %1215
    %v1218 = vlaneseq
    %v1219 = vshrl.u32 %v1218, 7
    %v1220 = vsub.s32 2, %v1219
    %v1221 = vrot.slane %v1153, %v1220
    %v1222 = vmul.f32 %v1216, %v1221
    %1223 = vset.pattern.permute.xlu0 3
    %1224 = vperm.xlu0 %1223, %v25
    %v1225 = vpop.permute.xlu0 %1224
    %v1227 = vlaneseq
    %v1228 = vshrl.u32 %v1227, 7
    %v1229 = vsub.s32 3, %v1228
    %v1230 = vrot.slane %v1153, %v1229
    %v1231 = vmul.f32 %v1225, %v1230
    %1232 = vset.pattern.permute.xlu0 4
    %1233 = vperm.xlu0 %1232, %v25
    %v1234 = vpop.permute.xlu0 %1233
    %v1236 = vlaneseq
    %v1237 = vshrl.u32 %v1236, 7
    %v1238 = vsub.s32 4, %v1237
    %v1239 = vrot.slane %v1153, %v1238
    %v1240 = vmul.f32 %v1234, %v1239
    %v1241 = vadd.f32 %v1204, %v1240
    %1242 = vset.pattern.permute.xlu0 5
    %1243 = vperm.xlu0 %1242, %v25
    %v1244 = vpop.permute.xlu0 %1243
    %v1246 = vlaneseq
    %v1247 = vshrl.u32 %v1246, 7
    %v1248 = vsub.s32 5, %v1247
    %v1249 = vrot.slane %v1153, %v1248
    %v1250 = vmul.f32 %v1244, %v1249
    %v1251 = vadd.f32 %v1213, %v1250
    %1252 = vset.pattern.permute.xlu0 6
    %1253 = vperm.xlu0 %1252, %v25
    %v1254 = vpop.permute.xlu0 %1253
    %v1256 = vlaneseq
    %v1257 = vshrl.u32 %v1256, 7
    %v1258 = vsub.s32 6, %v1257
    %v1259 = vrot.slane %v1153, %v1258
    %v1260 = vmul.f32 %v1254, %v1259
    %v1261 = vadd.f32 %v1222, %v1260
    %1262 = vset.pattern.permute.xlu0 7
    %1263 = vperm.xlu0 %1262, %v25
    %v1264 = vpop.permute.xlu0 %1263
    %v1266 = vlaneseq
    %v1267 = vshrl.u32 %v1266, 7
    %v1268 = vsub.s32 7, %v1267
    %v1269 = vrot.slane %v1153, %v1268
    %v1270 = vmul.f32 %v1264, %v1269
    %v1271 = vadd.f32 %v1231, %v1270
    %1272 = vset.pattern.permute.xlu0 8
    %1273 = vperm.xlu0 %1272, %v25
    %v1274 = vpop.permute.xlu0 %1273
    %v1276 = vlaneseq
    %v1277 = vshrl.u32 %v1276, 7
    %v1278 = vsub.s32 0, %v1277
    %v1279 = vrot.slane %v1154, %v1278
    %v1280 = vmul.f32 %v1274, %v1279
    %v1281 = vadd.f32 %v1241, %v1280
    %1282 = vset.pattern.permute.xlu0 9
    %1283 = vperm.xlu0 %1282, %v25
    %v1284 = vpop.permute.xlu0 %1283
    %v1286 = vlaneseq
    %v1287 = vshrl.u32 %v1286, 7
    %v1288 = vsub.s32 1, %v1287
    %v1289 = vrot.slane %v1154, %v1288
    %v1290 = vmul.f32 %v1284, %v1289
    %v1291 = vadd.f32 %v1251, %v1290
    %1292 = vset.pattern.permute.xlu0 10
    %1293 = vperm.xlu0 %1292, %v25
    %v1294 = vpop.permute.xlu0 %1293
    %v1296 = vlaneseq
    %v1297 = vshrl.u32 %v1296, 7
    %v1298 = vsub.s32 2, %v1297
    %v1299 = vrot.slane %v1154, %v1298
    %v1300 = vmul.f32 %v1294, %v1299
    %v1301 = vadd.f32 %v1261, %v1300
    %1302 = vset.pattern.permute.xlu0 11
    %1303 = vperm.xlu0 %1302, %v25
    %v1304 = vpop.permute.xlu0 %1303
    %v1306 = vlaneseq
    %v1307 = vshrl.u32 %v1306, 7
    %v1308 = vsub.s32 3, %v1307
    %v1309 = vrot.slane %v1154, %v1308
    %v1310 = vmul.f32 %v1304, %v1309
    %v1311 = vadd.f32 %v1271, %v1310
    %1312 = vset.pattern.permute.xlu0 12
    %1313 = vperm.xlu0 %1312, %v25
    %v1314 = vpop.permute.xlu0 %1313
    %v1316 = vlaneseq
    %v1317 = vshrl.u32 %v1316, 7
    %v1318 = vsub.s32 4, %v1317
    %v1319 = vrot.slane %v1154, %v1318
    %v1320 = vmul.f32 %v1314, %v1319
    %v1321 = vadd.f32 %v1281, %v1320
    %1322 = vset.pattern.permute.xlu0 13
    %1323 = vperm.xlu0 %1322, %v25
    %v1324 = vpop.permute.xlu0 %1323
    %v1326 = vlaneseq
    %v1327 = vshrl.u32 %v1326, 7
    %v1328 = vsub.s32 5, %v1327
    %v1329 = vrot.slane %v1154, %v1328
    %v1330 = vmul.f32 %v1324, %v1329
    %v1331 = vadd.f32 %v1291, %v1330
    %1332 = vset.pattern.permute.xlu0 14
    %1333 = vperm.xlu0 %1332, %v25
    %v1334 = vpop.permute.xlu0 %1333
    %v1336 = vlaneseq
    %v1337 = vshrl.u32 %v1336, 7
    %v1338 = vsub.s32 6, %v1337
    %v1339 = vrot.slane %v1154, %v1338
    %v1340 = vmul.f32 %v1334, %v1339
    %v1341 = vadd.f32 %v1301, %v1340
    %1342 = vset.pattern.permute.xlu0 15
    %1343 = vperm.xlu0 %1342, %v25
    %v1344 = vpop.permute.xlu0 %1343
    %v1346 = vlaneseq
    %v1347 = vshrl.u32 %v1346, 7
    %v1348 = vsub.s32 7, %v1347
    %v1349 = vrot.slane %v1154, %v1348
    %v1350 = vmul.f32 %v1344, %v1349
    %v1351 = vadd.f32 %v1311, %v1350
    %v1352 = vadd.f32 %v1321, %v1331
    %v1353 = vadd.f32 %v1341, %v1351
    %v1354 = vadd.f32 %v1352, %v1353
    %vm1355 = vcmask 1043456
    %v1356 = vsel %vm1355, %v1354, 0.0
    %1357 = vadd.xlane.f32.xlu0 %v1356
    %v1358 = vpop.xlane.xlu0 %1357
    %v1359 = vmul.f32 %v1358, 0.0078125
    %v1360 = vmul.f32 %v1354, %v1354
    %v1361 = vsel %vm1355, %v1360, 0.0
    %1362 = vadd.xlane.f32.xlu0 %v1361
    %v1363 = vpop.xlane.xlu0 %1362
    %v1364 = vmul.f32 %v1363, 0.0078125
    %v1365 = vmul.f32 %v1359, %v1359
    %v1366 = vsub.f32 %v1364, %v1365
    %v1367 = vadd.f32 %v1366, 0.001
    %v1368 = vrsqrt.pop %v1367
    %v1369 = vmul.f32 %v1368, %v1368
    %v1370 = vmul.f32 %v1366, %v1369
    %v1371 = vadd.f32 %v1370, 0.0
    %v1372 = vlaneseq
    %v1373 = vshrl.u32 %v1372, 7
    %v1374 = vsub.s32 0, %v1373
    %v1375 = vrot.slane %v1193, %v1374
    %v1376 = vmul.f32 %v1198, %v1375
    %v1377 = vlaneseq
    %v1378 = vshrl.u32 %v1377, 7
    %v1379 = vsub.s32 1, %v1378
    %v1380 = vrot.slane %v1193, %v1379
    %v1381 = vmul.f32 %v1207, %v1380
    %v1382 = vlaneseq
    %v1383 = vshrl.u32 %v1382, 7
    %v1384 = vsub.s32 2, %v1383
    %v1385 = vrot.slane %v1193, %v1384
    %v1386 = vmul.f32 %v1216, %v1385
    %v1387 = vlaneseq
    %v1388 = vshrl.u32 %v1387, 7
    %v1389 = vsub.s32 3, %v1388
    %v1390 = vrot.slane %v1193, %v1389
    %v1391 = vmul.f32 %v1225, %v1390
    %v1392 = vlaneseq
    %v1393 = vshrl.u32 %v1392, 7
    %v1394 = vsub.s32 4, %v1393
    %v1395 = vrot.slane %v1193, %v1394
    %v1396 = vmul.f32 %v1234, %v1395
    %v1397 = vadd.f32 %v1376, %v1396
    %v1398 = vlaneseq
    %v1399 = vshrl.u32 %v1398, 7
    %v1400 = vsub.s32 5, %v1399
    %v1401 = vrot.slane %v1193, %v1400
    %v1402 = vmul.f32 %v1244, %v1401
    %v1403 = vadd.f32 %v1381, %v1402
    %v1404 = vlaneseq
    %v1405 = vshrl.u32 %v1404, 7
    %v1406 = vsub.s32 6, %v1405
    %v1407 = vrot.slane %v1193, %v1406
    %v1408 = vmul.f32 %v1254, %v1407
    %v1409 = vadd.f32 %v1386, %v1408
    %v1410 = vlaneseq
    %v1411 = vshrl.u32 %v1410, 7
    %v1412 = vsub.s32 7, %v1411
    %v1413 = vrot.slane %v1193, %v1412
    %v1414 = vmul.f32 %v1264, %v1413
    %v1415 = vadd.f32 %v1391, %v1414
    %v1416 = vlaneseq
    %v1417 = vshrl.u32 %v1416, 7
    %v1418 = vsub.s32 0, %v1417
    %v1419 = vrot.slane %v1194, %v1418
    %v1420 = vmul.f32 %v1274, %v1419
    %v1421 = vadd.f32 %v1397, %v1420
    %v1422 = vlaneseq
    %v1423 = vshrl.u32 %v1422, 7
    %v1424 = vsub.s32 1, %v1423
    %v1425 = vrot.slane %v1194, %v1424
    %v1426 = vmul.f32 %v1284, %v1425
    %v1427 = vadd.f32 %v1403, %v1426
    %v1428 = vlaneseq
    %v1429 = vshrl.u32 %v1428, 7
    %v1430 = vsub.s32 2, %v1429
    %v1431 = vrot.slane %v1194, %v1430
    %v1432 = vmul.f32 %v1294, %v1431
    %v1433 = vadd.f32 %v1409, %v1432
    %v1434 = vlaneseq
    %v1435 = vshrl.u32 %v1434, 7
    %v1436 = vsub.s32 3, %v1435
    %v1437 = vrot.slane %v1194, %v1436
    %v1438 = vmul.f32 %v1304, %v1437
    %v1439 = vadd.f32 %v1415, %v1438
    %v1440 = vlaneseq
    %v1441 = vshrl.u32 %v1440, 7
    %v1442 = vsub.s32 4, %v1441
    %v1443 = vrot.slane %v1194, %v1442
    %v1444 = vmul.f32 %v1314, %v1443
    %v1445 = vadd.f32 %v1421, %v1444
    %v1446 = vlaneseq
    %v1447 = vshrl.u32 %v1446, 7
    %v1448 = vsub.s32 5, %v1447
    %v1449 = vrot.slane %v1194, %v1448
    %v1450 = vmul.f32 %v1324, %v1449
    %v1451 = vadd.f32 %v1427, %v1450
    %v1452 = vlaneseq
    %v1453 = vshrl.u32 %v1452, 7
    %v1454 = vsub.s32 6, %v1453
    %v1455 = vrot.slane %v1194, %v1454
    %v1456 = vmul.f32 %v1334, %v1455
    %v1457 = vadd.f32 %v1433, %v1456
    %v1458 = vlaneseq
    %v1459 = vshrl.u32 %v1458, 7
    %v1460 = vsub.s32 7, %v1459
    %v1461 = vrot.slane %v1194, %v1460
    %v1462 = vmul.f32 %v1344, %v1461
    %v1463 = vadd.f32 %v1439, %v1462
    %v1464 = vadd.f32 %v1445, %v1451
    %v1465 = vadd.f32 %v1457, %v1463
    %v1466 = vadd.f32 %v1464, %v1465
    %v1467 = vsel %vm1355, %v1466, 0.0
    %1468 = vadd.xlane.f32.xlu0 %v1467
    %v1469 = vpop.xlane.xlu0 %1468
    %v1470 = vmul.f32 %v1469, 0.0078125
    %v1471 = vmul.f32 %v1466, %v1466
    %v1472 = vsel %vm1355, %v1471, 0.0
    %1473 = vadd.xlane.f32.xlu0 %v1472
    %v1474 = vpop.xlane.xlu0 %1473
    %v1475 = vmul.f32 %v1474, 0.0078125
    %v1476 = vmul.f32 %v1470, %v1470
    %v1477 = vsub.f32 %v1475, %v1476
    %v1478 = vadd.f32 %v1477, 0.001
    %v1479 = vrsqrt.pop %v1478
    %v1480 = vmul.f32 %v1479, %v1479
    %v1481 = vmul.f32 %v1477, %v1480
    %v1482 = vadd.f32 %v1371, %v1481
    %v1483 = vmul.f32 %v1482, 0.5
    %v1484 = vadd.f32 %v1483, 1e-05
    %v1485 = vrsqrt.pop %v1484
    %v1486 = vmul.f32 %v27, %v1485
    %v1487 = vmul.f32 %v1368, %v1486
    %v1488 = vmul.f32 %v1359, %v1487
    %1490 = vrot.lane.b32.xlu0 %v1488, 1
    %v1491 = vpop.permute.xlu0 %1490
    %v1493 = vsub.f32 %v27, %v1491
    %1495 = vset.pattern.permute.xlu0 4
    %1496 = vperm.xlu0 %1495, %v1487
    %v1497 = vpop.permute.xlu0 %1496
    %v1499 = vmul.f32 %v1354, %v1497
    %1501 = vset.pattern.permute.xlu0 5
    %1502 = vperm.xlu0 %1501, %v1493
    %v1503 = vpop.permute.xlu0 %1502
    %v1505 = vadd.f32 %v1499, %v1503
    %v1506 = vmax.f32 %v1505, 0.0
    %v1507 = vmul.f32 %v1479, %v1486
    %v1508 = vmul.f32 %v1470, %v1507
    %1510 = vrot.lane.b32.xlu0 %v1508, 1
    %v1511 = vpop.permute.xlu0 %1510
    %v1513 = vsub.f32 %v27, %v1511
    %1515 = vset.pattern.permute.xlu0 4
    %1516 = vperm.xlu0 %1515, %v1507
    %v1517 = vpop.permute.xlu0 %1516
    %v1519 = vmul.f32 %v1466, %v1517
    %1521 = vset.pattern.permute.xlu0 5
    %1522 = vperm.xlu0 %1521, %v1513
    %v1523 = vpop.permute.xlu0 %1522
    %v1525 = vadd.f32 %v1519, %v1523
    %v1526 = vmax.f32 %v1525, 0.0
    %1528 = vset.pattern.permute.xlu0 0
    %1529 = vperm.xlu0 %1528, %v26
    %v1530 = vpop.permute.xlu0 %1529
    %v1532 = vmul.f32 %v1530, %v1506
    %1533 = vset.pattern.permute.xlu0 1
    %1534 = vperm.xlu0 %1533, %v26
    %v1535 = vpop.permute.xlu0 %1534
    %v1538 = vrot.slane %v1506, 1
    %v1540 = vmul.f32 %v1535, %v1538
    %1541 = vset.pattern.permute.xlu0 2
    %1542 = vperm.xlu0 %1541, %v26
    %v1543 = vpop.permute.xlu0 %1542
    %v1545 = vrot.slane %v1506, 2
    %v1547 = vmul.f32 %v1543, %v1545
    %1548 = vset.pattern.permute.xlu0 3
    %1549 = vperm.xlu0 %1548, %v26
    %v1550 = vpop.permute.xlu0 %1549
    %v1552 = vrot.slane %v1506, 3
    %v1554 = vmul.f32 %v1550, %v1552
    %v1555 = vadd.f32 %v1532, %v1540
    %v1556 = vadd.f32 %v1547, %v1554
    %v1557 = vadd.f32 %v1555, %v1556
    %1559 = vset.pattern.permute.xlu0 6
    %1560 = vperm.xlu0 %1559, %v27
    %v1561 = vpop.permute.xlu0 %1560
    %v1563 = vadd.f32 %v1557, %v1561
    %1564 = vst [vmem:[#allocation2] sm:$0x1] %v1563
    %v1565 = vmul.f32 %v1530, %v1526
    %v1567 = vrot.slane %v1526, 1
    %v1569 = vmul.f32 %v1535, %v1567
    %v1570 = vrot.slane %v1526, 2
    %v1572 = vmul.f32 %v1543, %v1570
    %v1573 = vrot.slane %v1526, 3
    %v1575 = vmul.f32 %v1550, %v1573
    %v1576 = vadd.f32 %v1565, %v1569
    %v1577 = vadd.f32 %v1572, %v1575
    %v1578 = vadd.f32 %v1576, %v1577
    %v1579 = vadd.f32 %v1578, %v1561
    %s1580 = scalar_lea.vmem [#allocation2], 1
    %1581 = vst [vmem:[%s1580] sm:$0x1] %v1579
    // Predicated region
    $region14: #{tpu_custom_call.1} parent=1 // pred_check
      _
    $region15: #{tpu_custom_call.1} parent=1 // pred_check_branch
      %1583 = sbr.rel (0) target = $region17
    $region16: #{tpu_custom_call.1} parent=1 // pred_region
      %s1585 = ssub.s32 32, 32
      %1586 = vsyncadd [#allocation3], %s1585
      %s1587 = sshll.u32 [#allocation2], 4
      %s1588 = int_to_ptr.vmem [resolvable:$true] %s1587
      %1593 = dma.vmem_to_hbm [thread:$0]  %s1588, 32, %s3, [#allocation3], 16, 16, 1
    $region17: #{tpu_custom_call.1} parent=1 // pred_fallthru
      _
    // Predicated region
    $region18: #{tpu_custom_call.1} parent=1 // pred_check
      _
    $region19: #{tpu_custom_call.1} parent=1 // pred_check_branch
      %1595 = sbr.rel (0) target = $region21
    $region20: #{tpu_custom_call.1} parent=1 // pred_region
      %1596 = dma.done [#allocation3], 32
    $region21: #{tpu_custom_call.1} parent=1 // pred_fallthru
      _
    %1597 = vsyncpa [#allocation3], 1

</llo_original>
